<compile_context>
chip_gen: v5e
topology: v5e:2x2
jax: 0.10.0
libtpu: 0.0.40
codegen_flags: <defaults>
</compile_context>

<pallas_src>
import functools

import numpy as np
import jax
import jax.numpy as jnp
from jax.experimental import pallas as pl

D_MODEL = 32
N_HEADS = 4
D_FF = 64
S_TGT = 8
S_SRC = 16
BATCH = 2
LN_EPS = 1e-6
DROPOUT_PROB = 0.1  # unused at inference (identity)
NEG_INF = -1e9


# ----------------------------- kernel helpers -----------------------------

def _layernorm(x, gamma, beta):
    mean = jnp.mean(x, axis=-1, keepdims=True)
    var = jnp.mean((x - mean) ** 2, axis=-1, keepdims=True)
    return (x - mean) * jax.lax.rsqrt(var + LN_EPS) * gamma + beta


def _softmax_rows(s):
    s = s - jnp.max(s, axis=-1, keepdims=True)
    p = jnp.exp(s)
    return p * pl.reciprocal(jnp.sum(p, axis=-1, keepdims=True), approx=True)


def _per_head_attention(q_b, k_b, v_b, bias_b, num_heads, dk):
    """q_b: (Sq, H*dk); k_b, v_b: (Skv, H*dk); bias_b additive, broadcastable to
    (Sq, Skv).  1/sqrt(dk) already folded into q (wrapper-side).  The per-head
    score/PV dots are inherently tiny at dk=8; everything around them is
    consolidated into full-batch lane-dense matmuls outside this helper.
    Returns (Sq, H*dk) with heads lane-packed in standard head-major order."""
    outs = []
    for h in range(num_heads):          # H = 4, fully unrolled
        c = h * dk
        q_h = q_b[:, c:c + dk]
        k_h = k_b[:, c:c + dk]
        v_h = v_b[:, c:c + dk]
        s = jnp.einsum("qd,kd->qk", q_h, k_h,
                       preferred_element_type=jnp.float32) + bias_b
        p = _softmax_rows(s)
        outs.append(jnp.dot(p, v_h, preferred_element_type=jnp.float32))
    return jnp.concatenate(outs, axis=1)


# ------------------------------ fused kernel ------------------------------

def decoder_layer_kernel(
        x_ref, mem_ref, tgt_bias_ref, src_bias_ref, ln_ref, b_ref,
        sa_wqkv_ref, sa_wo_ref, ea_wq_ref, ea_wkv_ref, ea_wo_ref,
        ff_w1_ref, ff_w2_ref,
        out_ref, *, batch, seq_q, seq_kv, num_heads):
    B, Sq, Skv, H = batch, seq_q, seq_kv, num_heads
    D = x_ref.shape[-1]
    dk = D // H
    dff = ff_w1_ref.shape[-1]

    x = x_ref[...]              # (B*Sq, D)
    mem = mem_ref[...]          # (B*Skv, D)
    tgt_b = tgt_bias_ref[...]   # (Sq, Sq)   additive (0 keep / -1e9 drop)
    src_b = src_bias_ref[...]   # (B, Skv)   additive (0 keep / -1e9 drop)
    ln = ln_ref[...]            # (6, D)     [sa_g, sa_b, ea_g, ea_b, ff_g, ff_b]

    # ---- sublayer 0: masked self-attention (pre-norm + residual) ----
    xn = _layernorm(x, ln[0:1], ln[1:2])
    # Fused Q/K/V projection for the whole batch: one (B*Sq, D) @ (D, 3D) matmul.
    proj = jnp.dot(xn, sa_wqkv_ref[...],
                   preferred_element_type=jnp.float32) + b_ref[0:1, :]
    rows = []
    for b in range(B):                      # B = 2, fully unrolled
        r = b * Sq
        rows.append(_per_head_attention(
            proj[r:r + Sq, 0:D], proj[r:r + Sq, D:2 * D],
            proj[r:r + Sq, 2 * D:3 * D], tgt_b, H, dk))
    attn = jnp.concatenate(rows, axis=0)    # (B*Sq, D), heads lane-packed
    # Output projection: one (B*Sq, D) @ (D, D) matmul.
    x = x + jnp.dot(attn, sa_wo_ref[...],
                    preferred_element_type=jnp.float32) + b_ref[1:2, :D]

    # ---- sublayer 1: encoder-decoder attention ----
    xn = _layernorm(x, ln[2:3], ln[3:4])
    q2 = jnp.dot(xn, ea_wq_ref[...],
                 preferred_element_type=jnp.float32) + b_ref[2:3, :D]       # (B*Sq, D)
    kv2 = jnp.dot(mem, ea_wkv_ref[...],
                  preferred_element_type=jnp.float32) + b_ref[3:4, :2 * D]  # (B*Skv, 2D)
    rows = []
    for b in range(B):
        rq, rk = b * Sq, b * Skv
        rows.append(_per_head_attention(
            q2[rq:rq + Sq, :], kv2[rk:rk + Skv, 0:D],
            kv2[rk:rk + Skv, D:2 * D], src_b[b:b + 1, :], H, dk))
    attn = jnp.concatenate(rows, axis=0)
    x = x + jnp.dot(attn, ea_wo_ref[...],
                    preferred_element_type=jnp.float32) + b_ref[4:5, :D]

    # ---- sublayer 2: position-wise feed-forward over the (B*Sq, D) slab ----
    xn = _layernorm(x, ln[4:5], ln[5:6])
    h = jnp.dot(xn, ff_w1_ref[...],
                preferred_element_type=jnp.float32) + b_ref[5:6, :dff]
    h = jnp.maximum(h, 0.0)
    y = jnp.dot(h, ff_w2_ref[...],
                preferred_element_type=jnp.float32) + b_ref[6:7, :D]
    out_ref[...] = x + y


# --------------------- wrapper-side operand preparation ---------------------

def _pad_row(v, width):
    return jnp.pad(v, ((0, 0), (0, width - v.shape[-1])))


def decoder_layer(x, memory, src_mask, tgt_mask, params):
    """x: (B, S_tgt, D); memory: (B, S_src, D);
       src_mask: (B, 1, S_src); tgt_mask: (1, S_tgt, S_tgt)."""
    B, Sq, D = x.shape
    Skv = memory.shape[1]
    dk = D // N_HEADS
    scale = 1.0 / float(np.sqrt(dk))
    bw = 3 * D

    sa, ea, ff = params["self_attn"], params["enc_attn"], params["ff"]

    # Fused lane-dense weight stacks; 1/sqrt(dk) folded into the Q path.
    sa_wqkv = jnp.concatenate([sa["wq"] * scale, sa["wk"], sa["wv"]], axis=1)  # (D, 3D)
    ea_wq = ea["wq"] * scale                                                   # (D, D)
    ea_wkv = jnp.concatenate([ea["wk"], ea["wv"]], axis=1)                     # (D, 2D)

    # Pack the six LayerNorm rows and the seven small bias vectors -> 2 operands.
    ln_pack = jnp.concatenate([sa["ln_g"], sa["ln_b"], ea["ln_g"], ea["ln_b"],
                               ff["ln_g"], ff["ln_b"]], axis=0)                # (6, D)
    bias_pack = jnp.concatenate([
        jnp.concatenate([sa["bq"] * scale, sa["bk"], sa["bv"]], axis=1),       # row 0: sa bqkv
        _pad_row(sa["bo"], bw),                                                # row 1
        _pad_row(ea["bq"] * scale, bw),                                        # row 2
        _pad_row(jnp.concatenate([ea["bk"], ea["bv"]], axis=1), bw),           # row 3
        _pad_row(ea["bo"], bw),                                                # row 4
        _pad_row(ff["b1"], bw),                                                # row 5
        _pad_row(ff["b2"], bw),                                                # row 6
    ], axis=0)                                                                 # (7, 3D)

    # Masks -> un-broadcast additive biases (0 keep / -1e9 drop).
    tgt_bias = jnp.where(tgt_mask[0] > 0, 0.0, NEG_INF).astype(jnp.float32)      # (Sq, Sq)
    src_bias = jnp.where(src_mask[:, 0, :] > 0, 0.0, NEG_INF).astype(jnp.float32)  # (B, Skv)

    kernel = functools.partial(decoder_layer_kernel, batch=B, seq_q=Sq,
                               seq_kv=Skv, num_heads=N_HEADS)
    # Single invocation (grid=()): every operand fits in VMEM whole.
    out2d = pl.pallas_call(
        kernel,
        out_shape=jax.ShapeDtypeStruct((B * Sq, D), jnp.float32),
    )(x.reshape(B * Sq, D), memory.reshape(B * Skv, D),
      tgt_bias, src_bias, ln_pack, bias_pack,
      sa_wqkv, sa["wo"], ea_wq, ea_wkv, ea["wo"], ff["w1"], ff["w2"])
    return out2d.reshape(B, Sq, D)


# ---------------- deterministic parameter construction -----------------

def make_params(key):
    ks = jax.random.split(key, 16)

    def lin(k, din, dout):
        kw, kb = jax.random.split(k)
        return (jax.random.normal(kw, (din, dout), jnp.float32) * 0.05,
                jax.random.normal(kb, (1, dout), jnp.float32) * 0.01)

    def attn_params(k):
        k0, k1, k2, k3 = jax.random.split(k, 4)
        wq, bq = lin(k0, D_MODEL, D_MODEL)
        wk, bk = lin(k1, D_MODEL, D_MODEL)
        wv, bv = lin(k2, D_MODEL, D_MODEL)
        wo, bo = lin(k3, D_MODEL, D_MODEL)
        return dict(ln_g=jnp.ones((1, D_MODEL), jnp.float32),
                    ln_b=jnp.zeros((1, D_MODEL), jnp.float32),
                    wq=wq, bq=bq, wk=wk, bk=bk, wv=wv, bv=bv, wo=wo, bo=bo)

    w1, b1 = lin(ks[10], D_MODEL, D_FF)
    w2, b2 = lin(ks[11], D_FF, D_MODEL)
    return dict(
        self_attn=attn_params(ks[0]),
        enc_attn=attn_params(ks[1]),
        ff=dict(ln_g=jnp.ones((1, D_MODEL), jnp.float32),
                ln_b=jnp.zeros((1, D_MODEL), jnp.float32),
                w1=w1, b1=b1, w2=w2, b2=b2),
    )


# ---------------- pure-JAX reference for verification -----------------

def _ref_mha(q_in, kv_in, mask, p):
    q = q_in @ p["wq"] + p["bq"]
    k = kv_in @ p["wk"] + p["bk"]
    v = kv_in @ p["wv"] + p["bv"]
    B, Sq, D = q.shape
    Skv = k.shape[1]
    dk = D // N_HEADS
    qh = q.reshape(B, Sq, N_HEADS, dk).transpose(0, 2, 1, 3)
    kh = k.reshape(B, Skv, N_HEADS, dk).transpose(0, 2, 1, 3)
    vh = v.reshape(B, Skv, N_HEADS, dk).transpose(0, 2, 1, 3)
    s = jnp.einsum("bhqd,bhkd->bhqk", qh, kh) / np.sqrt(dk)
    s = jnp.where(mask[:, None] > 0, s, -1e9)
    pw = jax.nn.softmax(s, axis=-1)
    o = jnp.einsum("bhqk,bhkd->bhqd", pw, vh)
    o = o.transpose(0, 2, 1, 3).reshape(B, Sq, D)
    return o @ p["wo"] + p["bo"]


def _ref_ln(x, g, b):
    m = x.mean(-1, keepdims=True)
    v = ((x - m) ** 2).mean(-1, keepdims=True)
    return (x - m) * jax.lax.rsqrt(v + LN_EPS) * g + b


def decoder_layer_ref(x, memory, src_mask, tgt_mask, params):
    B, Sq, _ = x.shape
    Skv = memory.shape[1]
    tgt_m = jnp.broadcast_to(tgt_mask.astype(jnp.float32), (B, Sq, Sq))
    src_m = jnp.broadcast_to(src_mask.astype(jnp.float32), (B, Sq, Skv))
    p = params["self_attn"]
    xn = _ref_ln(x, p["ln_g"], p["ln_b"])
    x = x + _ref_mha(xn, xn, tgt_m, p)
    p = params["enc_attn"]
    xn = _ref_ln(x, p["ln_g"], p["ln_b"])
    x = x + _ref_mha(xn, memory, src_m, p)
    p = params["ff"]
    xn = _ref_ln(x, p["ln_g"], p["ln_b"])
    h = jnp.maximum(xn @ p["w1"] + p["b1"], 0.0)
    return x + (h @ p["w2"] + p["b2"])


if __name__ == "__main__":
    key = jax.random.PRNGKey(0)
    kx, km, kp = jax.random.split(key, 3)
    x = jax.random.normal(kx, (BATCH, S_TGT, D_MODEL), jnp.float32)
    memory = jax.random.normal(km, (BATCH, S_SRC, D_MODEL), jnp.float32)
    params = make_params(kp)

    # causal target mask (1, S_tgt, S_tgt); src padding mask (B, 1, S_src)
    tgt_mask = jnp.tril(jnp.ones((1, S_TGT, S_TGT), jnp.float32))
    src_mask = jnp.ones((BATCH, 1, S_SRC), jnp.float32)
    src_mask = src_mask.at[1, 0, S_SRC - 3:].set(0.0)  # pad tail of batch 1

    out = decoder_layer(x, memory, src_mask, tgt_mask, params)
    out = jax.block_until_ready(out)

    ref = decoder_layer_ref(x, memory, src_mask, tgt_mask, params)
    # Tolerance accounts for the EUP approximate reciprocal in the softmax.
    np.testing.assert_allclose(np.asarray(out), np.asarray(ref),
                               rtol=2e-3, atol=2e-3)
    print("KERNEL_OK")
</pallas_src>

<mosaic_0001>
module attributes {stable_mosaic.version = 11 : i64} {
  func.func @decoder_layer_kernel(%arg0: memref<16x32xf32, #tpu.memory_space<vmem>>, %arg1: memref<32x32xf32, #tpu.memory_space<vmem>>, %arg2: memref<8x8xf32, #tpu.memory_space<vmem>>, %arg3: memref<2x16xf32, #tpu.memory_space<vmem>>, %arg4: memref<6x32xf32, #tpu.memory_space<vmem>>, %arg5: memref<7x96xf32, #tpu.memory_space<vmem>>, %arg6: memref<32x96xf32, #tpu.memory_space<vmem>>, %arg7: memref<32x32xf32, #tpu.memory_space<vmem>>, %arg8: memref<32x32xf32, #tpu.memory_space<vmem>>, %arg9: memref<32x64xf32, #tpu.memory_space<vmem>>, %arg10: memref<32x32xf32, #tpu.memory_space<vmem>>, %arg11: memref<32x64xf32, #tpu.memory_space<vmem>>, %arg12: memref<64x32xf32, #tpu.memory_space<vmem>>, %arg13: memref<16x32xf32, #tpu.memory_space<vmem>>) attributes {dimension_semantics = [], scalar_prefetch = 0 : i64, scratch_operands = 0 : i64, tpu.core_type = #tpu.core_type<tc>} {
    %c0 = arith.constant 0 : index
    %c0_0 = arith.constant 0 : index
    %0 = vector.load %arg0[%c0, %c0_0] : memref<16x32xf32, #tpu.memory_space<vmem>>, vector<16x32xf32>
    %c0_1 = arith.constant 0 : index
    %c0_2 = arith.constant 0 : index
    %1 = vector.load %arg1[%c0_1, %c0_2] : memref<32x32xf32, #tpu.memory_space<vmem>>, vector<32x32xf32>
    %c0_3 = arith.constant 0 : index
    %c0_4 = arith.constant 0 : index
    %2 = vector.load %arg2[%c0_3, %c0_4] : memref<8x8xf32, #tpu.memory_space<vmem>>, vector<8x8xf32>
    %c0_5 = arith.constant 0 : index
    %c0_6 = arith.constant 0 : index
    %3 = vector.load %arg3[%c0_5, %c0_6] : memref<2x16xf32, #tpu.memory_space<vmem>>, vector<2x16xf32>
    %c0_7 = arith.constant 0 : index
    %c0_8 = arith.constant 0 : index
    %4 = vector.load %arg4[%c0_7, %c0_8] : memref<6x32xf32, #tpu.memory_space<vmem>>, vector<6x32xf32>
    %5 = vector.extract_strided_slice %4 {offsets = [0, 0], sizes = [1, 32], strides = [1, 1]} : vector<6x32xf32> to vector<1x32xf32>
    %6 = vector.extract_strided_slice %4 {offsets = [1, 0], sizes = [1, 32], strides = [1, 1]} : vector<6x32xf32> to vector<1x32xf32>
    %cst = arith.constant dense<0.000000e+00> : vector<16xf32>
    %7 = vector.multi_reduction <add>, %0, %cst [1] : vector<16x32xf32> to vector<16xf32>
    %8 = vector.shape_cast %7 : vector<16xf32> to vector<16x1xf32>
    %cst_9 = arith.constant 3.200000e+01 : f32
    %9 = vector.broadcast %cst_9 : f32 to vector<16x1xf32>
    %10 = arith.divf %8, %9 : vector<16x1xf32>
    %11 = vector.broadcast %10 : vector<16x1xf32> to vector<16x32xf32>
    %12 = arith.subf %0, %11 : vector<16x32xf32>
    %13 = arith.mulf %12, %12 : vector<16x32xf32>
    %cst_10 = arith.constant dense<0.000000e+00> : vector<16xf32>
    %14 = vector.multi_reduction <add>, %13, %cst_10 [1] : vector<16x32xf32> to vector<16xf32>
    %15 = vector.shape_cast %14 : vector<16xf32> to vector<16x1xf32>
    %cst_11 = arith.constant 3.200000e+01 : f32
    %16 = vector.broadcast %cst_11 : f32 to vector<16x1xf32>
    %17 = arith.divf %15, %16 : vector<16x1xf32>
    %18 = vector.broadcast %10 : vector<16x1xf32> to vector<16x32xf32>
    %19 = arith.subf %0, %18 : vector<16x32xf32>
    %cst_12 = arith.constant 9.99999997E-7 : f32
    %20 = vector.broadcast %cst_12 : f32 to vector<16x1xf32>
    %21 = arith.addf %17, %20 : vector<16x1xf32>
    %22 = math.rsqrt %21 : vector<16x1xf32>
    %23 = vector.broadcast %22 : vector<16x1xf32> to vector<16x32xf32>
    %24 = arith.mulf %19, %23 : vector<16x32xf32>
    %25 = vector.broadcast %5 : vector<1x32xf32> to vector<16x32xf32>
    %26 = arith.mulf %24, %25 : vector<16x32xf32>
    %27 = vector.broadcast %6 : vector<1x32xf32> to vector<16x32xf32>
    %28 = arith.addf %26, %27 : vector<16x32xf32>
    %c0_13 = arith.constant 0 : index
    %c0_14 = arith.constant 0 : index
    %29 = vector.load %arg6[%c0_13, %c0_14] : memref<32x96xf32, #tpu.memory_space<vmem>>, vector<32x96xf32>
    %cst_15 = arith.constant dense<0.000000e+00> : vector<16x96xf32>
    %30 = tpu.matmul %28, %29, %cst_15 {dimension_numbers = #tpu.dot_dimension_numbers<[1], [0], [0], [1], [0, 0, 1, 1], [], []>} : vector<16x32xf32>, vector<32x96xf32>, vector<16x96xf32> -> vector<16x96xf32>
    %c0_16 = arith.constant 0 : index
    %c0_17 = arith.constant 0 : index
    %31 = vector.load %arg5[%c0_16, %c0_17] : memref<7x96xf32, #tpu.memory_space<vmem>>, vector<1x96xf32>
    %32 = vector.broadcast %31 : vector<1x96xf32> to vector<16x96xf32>
    %33 = arith.addf %30, %32 : vector<16x96xf32>
    %34 = vector.extract_strided_slice %33 {offsets = [0, 0], sizes = [8, 32], strides = [1, 1]} : vector<16x96xf32> to vector<8x32xf32>
    %35 = vector.extract_strided_slice %33 {offsets = [0, 32], sizes = [8, 32], strides = [1, 1]} : vector<16x96xf32> to vector<8x32xf32>
    %36 = vector.extract_strided_slice %33 {offsets = [0, 64], sizes = [8, 32], strides = [1, 1]} : vector<16x96xf32> to vector<8x32xf32>
    %37 = vector.extract_strided_slice %34 {offsets = [0, 0], sizes = [8, 8], strides = [1, 1]} : vector<8x32xf32> to vector<8x8xf32>
    %38 = vector.extract_strided_slice %35 {offsets = [0, 0], sizes = [8, 8], strides = [1, 1]} : vector<8x32xf32> to vector<8x8xf32>
    %39 = vector.extract_strided_slice %36 {offsets = [0, 0], sizes = [8, 8], strides = [1, 1]} : vector<8x32xf32> to vector<8x8xf32>
    "tpu.trace_start"() <{level = 10 : i32, message = "qd,kd->qk"}> : () -> ()
    %cst_18 = arith.constant dense<0.000000e+00> : vector<8x8xf32>
    %40 = tpu.matmul %37, %38, %cst_18 {dimension_numbers = #tpu.dot_dimension_numbers<[1], [1], [0], [0], [0, 0, 1, 0], [], []>} : vector<8x8xf32>, vector<8x8xf32>, vector<8x8xf32> -> vector<8x8xf32>
    "tpu.trace_stop"() : () -> ()
    %41 = arith.addf %40, %2 : vector<8x8xf32>
    %cst_19 = arith.constant dense<0xFF800000> : vector<8xf32>
    %42 = vector.multi_reduction <maximumf>, %41, %cst_19 [1] : vector<8x8xf32> to vector<8xf32>
    %43 = vector.shape_cast %42 : vector<8xf32> to vector<8x1xf32>
    %44 = vector.broadcast %43 : vector<8x1xf32> to vector<8x8xf32>
    %45 = arith.subf %41, %44 : vector<8x8xf32>
    %46 = math.exp %45 : vector<8x8xf32>
    %cst_20 = arith.constant dense<0.000000e+00> : vector<8xf32>
    %47 = vector.multi_reduction <add>, %46, %cst_20 [1] : vector<8x8xf32> to vector<8xf32>
    %48 = vector.shape_cast %47 : vector<8xf32> to vector<8x1xf32>
    %49 = tpu.reciprocal %48 {approx = true} : vector<8x1xf32> -> vector<8x1xf32>
    %50 = vector.broadcast %49 : vector<8x1xf32> to vector<8x8xf32>
    %51 = arith.mulf %46, %50 : vector<8x8xf32>
    %cst_21 = arith.constant dense<0.000000e+00> : vector<8x8xf32>
    %52 = tpu.matmul %51, %39, %cst_21 {dimension_numbers = #tpu.dot_dimension_numbers<[1], [0], [0], [1], [0, 0, 1, 1], [], []>} : vector<8x8xf32>, vector<8x8xf32>, vector<8x8xf32> -> vector<8x8xf32>
    %53 = vector.extract_strided_slice %34 {offsets = [0, 8], sizes = [8, 8], strides = [1, 1]} : vector<8x32xf32> to vector<8x8xf32>
    %54 = vector.extract_strided_slice %35 {offsets = [0, 8], sizes = [8, 8], strides = [1, 1]} : vector<8x32xf32> to vector<8x8xf32>
    %55 = vector.extract_strided_slice %36 {offsets = [0, 8], sizes = [8, 8], strides = [1, 1]} : vector<8x32xf32> to vector<8x8xf32>
    "tpu.trace_start"() <{level = 10 : i32, message = "qd,kd->qk"}> : () -> ()
    %cst_22 = arith.constant dense<0.000000e+00> : vector<8x8xf32>
    %56 = tpu.matmul %53, %54, %cst_22 {dimension_numbers = #tpu.dot_dimension_numbers<[1], [1], [0], [0], [0, 0, 1, 0], [], []>} : vector<8x8xf32>, vector<8x8xf32>, vector<8x8xf32> -> vector<8x8xf32>
    "tpu.trace_stop"() : () -> ()
    %57 = arith.addf %56, %2 : vector<8x8xf32>
    %cst_23 = arith.constant dense<0xFF800000> : vector<8xf32>
    %58 = vector.multi_reduction <maximumf>, %57, %cst_23 [1] : vector<8x8xf32> to vector<8xf32>
    %59 = vector.shape_cast %58 : vector<8xf32> to vector<8x1xf32>
    %60 = vector.broadcast %59 : vector<8x1xf32> to vector<8x8xf32>
    %61 = arith.subf %57, %60 : vector<8x8xf32>
    %62 = math.exp %61 : vector<8x8xf32>
    %cst_24 = arith.constant dense<0.000000e+00> : vector<8xf32>
    %63 = vector.multi_reduction <add>, %62, %cst_24 [1] : vector<8x8xf32> to vector<8xf32>
    %64 = vector.shape_cast %63 : vector<8xf32> to vector<8x1xf32>
    %65 = tpu.reciprocal %64 {approx = true} : vector<8x1xf32> -> vector<8x1xf32>
    %66 = vector.broadcast %65 : vector<8x1xf32> to vector<8x8xf32>
    %67 = arith.mulf %62, %66 : vector<8x8xf32>
    %cst_25 = arith.constant dense<0.000000e+00> : vector<8x8xf32>
    %68 = tpu.matmul %67, %55, %cst_25 {dimension_numbers = #tpu.dot_dimension_numbers<[1], [0], [0], [1], [0, 0, 1, 1], [], []>} : vector<8x8xf32>, vector<8x8xf32>, vector<8x8xf32> -> vector<8x8xf32>
    %69 = vector.extract_strided_slice %34 {offsets = [0, 16], sizes = [8, 8], strides = [1, 1]} : vector<8x32xf32> to vector<8x8xf32>
    %70 = vector.extract_strided_slice %35 {offsets = [0, 16], sizes = [8, 8], strides = [1, 1]} : vector<8x32xf32> to vector<8x8xf32>
    %71 = vector.extract_strided_slice %36 {offsets = [0, 16], sizes = [8, 8], strides = [1, 1]} : vector<8x32xf32> to vector<8x8xf32>
    "tpu.trace_start"() <{level = 10 : i32, message = "qd,kd->qk"}> : () -> ()
    %cst_26 = arith.constant dense<0.000000e+00> : vector<8x8xf32>
    %72 = tpu.matmul %69, %70, %cst_26 {dimension_numbers = #tpu.dot_dimension_numbers<[1], [1], [0], [0], [0, 0, 1, 0], [], []>} : vector<8x8xf32>, vector<8x8xf32>, vector<8x8xf32> -> vector<8x8xf32>
    "tpu.trace_stop"() : () -> ()
    %73 = arith.addf %72, %2 : vector<8x8xf32>
    %cst_27 = arith.constant dense<0xFF800000> : vector<8xf32>
    %74 = vector.multi_reduction <maximumf>, %73, %cst_27 [1] : vector<8x8xf32> to vector<8xf32>
    %75 = vector.shape_cast %74 : vector<8xf32> to vector<8x1xf32>
    %76 = vector.broadcast %75 : vector<8x1xf32> to vector<8x8xf32>
    %77 = arith.subf %73, %76 : vector<8x8xf32>
    %78 = math.exp %77 : vector<8x8xf32>
    %cst_28 = arith.constant dense<0.000000e+00> : vector<8xf32>
    %79 = vector.multi_reduction <add>, %78, %cst_28 [1] : vector<8x8xf32> to vector<8xf32>
    %80 = vector.shape_cast %79 : vector<8xf32> to vector<8x1xf32>
    %81 = tpu.reciprocal %80 {approx = true} : vector<8x1xf32> -> vector<8x1xf32>
    %82 = vector.broadcast %81 : vector<8x1xf32> to vector<8x8xf32>
    %83 = arith.mulf %78, %82 : vector<8x8xf32>
    %cst_29 = arith.constant dense<0.000000e+00> : vector<8x8xf32>
    %84 = tpu.matmul %83, %71, %cst_29 {dimension_numbers = #tpu.dot_dimension_numbers<[1], [0], [0], [1], [0, 0, 1, 1], [], []>} : vector<8x8xf32>, vector<8x8xf32>, vector<8x8xf32> -> vector<8x8xf32>
    %85 = vector.extract_strided_slice %34 {offsets = [0, 24], sizes = [8, 8], strides = [1, 1]} : vector<8x32xf32> to vector<8x8xf32>
    %86 = vector.extract_strided_slice %35 {offsets = [0, 24], sizes = [8, 8], strides = [1, 1]} : vector<8x32xf32> to vector<8x8xf32>
    %87 = vector.extract_strided_slice %36 {offsets = [0, 24], sizes = [8, 8], strides = [1, 1]} : vector<8x32xf32> to vector<8x8xf32>
    "tpu.trace_start"() <{level = 10 : i32, message = "qd,kd->qk"}> : () -> ()
    %cst_30 = arith.constant dense<0.000000e+00> : vector<8x8xf32>
    %88 = tpu.matmul %85, %86, %cst_30 {dimension_numbers = #tpu.dot_dimension_numbers<[1], [1], [0], [0], [0, 0, 1, 0], [], []>} : vector<8x8xf32>, vector<8x8xf32>, vector<8x8xf32> -> vector<8x8xf32>
    "tpu.trace_stop"() : () -> ()
    %89 = arith.addf %88, %2 : vector<8x8xf32>
    %cst_31 = arith.constant dense<0xFF800000> : vector<8xf32>
    %90 = vector.multi_reduction <maximumf>, %89, %cst_31 [1] : vector<8x8xf32> to vector<8xf32>
    %91 = vector.shape_cast %90 : vector<8xf32> to vector<8x1xf32>
    %92 = vector.broadcast %91 : vector<8x1xf32> to vector<8x8xf32>
    %93 = arith.subf %89, %92 : vector<8x8xf32>
    %94 = math.exp %93 : vector<8x8xf32>
    %cst_32 = arith.constant dense<0.000000e+00> : vector<8xf32>
    %95 = vector.multi_reduction <add>, %94, %cst_32 [1] : vector<8x8xf32> to vector<8xf32>
    %96 = vector.shape_cast %95 : vector<8xf32> to vector<8x1xf32>
    %97 = tpu.reciprocal %96 {approx = true} : vector<8x1xf32> -> vector<8x1xf32>
    %98 = vector.broadcast %97 : vector<8x1xf32> to vector<8x8xf32>
    %99 = arith.mulf %94, %98 : vector<8x8xf32>
    %cst_33 = arith.constant dense<0.000000e+00> : vector<8x8xf32>
    %100 = tpu.matmul %99, %87, %cst_33 {dimension_numbers = #tpu.dot_dimension_numbers<[1], [0], [0], [1], [0, 0, 1, 1], [], []>} : vector<8x8xf32>, vector<8x8xf32>, vector<8x8xf32> -> vector<8x8xf32>
    %101 = tpu.concatenate %52, %68, %84, %100 in 1 : vector<8x8xf32>, vector<8x8xf32>, vector<8x8xf32>, vector<8x8xf32> -> vector<8x32xf32>
    %102 = vector.extract_strided_slice %33 {offsets = [8, 0], sizes = [8, 32], strides = [1, 1]} : vector<16x96xf32> to vector<8x32xf32>
    %103 = vector.extract_strided_slice %33 {offsets = [8, 32], sizes = [8, 32], strides = [1, 1]} : vector<16x96xf32> to vector<8x32xf32>
    %104 = vector.extract_strided_slice %33 {offsets = [8, 64], sizes = [8, 32], strides = [1, 1]} : vector<16x96xf32> to vector<8x32xf32>
    %105 = vector.extract_strided_slice %102 {offsets = [0, 0], sizes = [8, 8], strides = [1, 1]} : vector<8x32xf32> to vector<8x8xf32>
    %106 = vector.extract_strided_slice %103 {offsets = [0, 0], sizes = [8, 8], strides = [1, 1]} : vector<8x32xf32> to vector<8x8xf32>
    %107 = vector.extract_strided_slice %104 {offsets = [0, 0], sizes = [8, 8], strides = [1, 1]} : vector<8x32xf32> to vector<8x8xf32>
    "tpu.trace_start"() <{level = 10 : i32, message = "qd,kd->qk"}> : () -> ()
    %cst_34 = arith.constant dense<0.000000e+00> : vector<8x8xf32>
    %108 = tpu.matmul %105, %106, %cst_34 {dimension_numbers = #tpu.dot_dimension_numbers<[1], [1], [0], [0], [0, 0, 1, 0], [], []>} : vector<8x8xf32>, vector<8x8xf32>, vector<8x8xf32> -> vector<8x8xf32>
    "tpu.trace_stop"() : () -> ()
    %109 = arith.addf %108, %2 : vector<8x8xf32>
    %cst_35 = arith.constant dense<0xFF800000> : vector<8xf32>
    %110 = vector.multi_reduction <maximumf>, %109, %cst_35 [1] : vector<8x8xf32> to vector<8xf32>
    %111 = vector.shape_cast %110 : vector<8xf32> to vector<8x1xf32>
    %112 = vector.broadcast %111 : vector<8x1xf32> to vector<8x8xf32>
    %113 = arith.subf %109, %112 : vector<8x8xf32>
    %114 = math.exp %113 : vector<8x8xf32>
    %cst_36 = arith.constant dense<0.000000e+00> : vector<8xf32>
    %115 = vector.multi_reduction <add>, %114, %cst_36 [1] : vector<8x8xf32> to vector<8xf32>
    %116 = vector.shape_cast %115 : vector<8xf32> to vector<8x1xf32>
    %117 = tpu.reciprocal %116 {approx = true} : vector<8x1xf32> -> vector<8x1xf32>
    %118 = vector.broadcast %117 : vector<8x1xf32> to vector<8x8xf32>
    %119 = arith.mulf %114, %118 : vector<8x8xf32>
    %cst_37 = arith.constant dense<0.000000e+00> : vector<8x8xf32>
    %120 = tpu.matmul %119, %107, %cst_37 {dimension_numbers = #tpu.dot_dimension_numbers<[1], [0], [0], [1], [0, 0, 1, 1], [], []>} : vector<8x8xf32>, vector<8x8xf32>, vector<8x8xf32> -> vector<8x8xf32>
    %121 = vector.extract_strided_slice %102 {offsets = [0, 8], sizes = [8, 8], strides = [1, 1]} : vector<8x32xf32> to vector<8x8xf32>
    %122 = vector.extract_strided_slice %103 {offsets = [0, 8], sizes = [8, 8], strides = [1, 1]} : vector<8x32xf32> to vector<8x8xf32>
    %123 = vector.extract_strided_slice %104 {offsets = [0, 8], sizes = [8, 8], strides = [1, 1]} : vector<8x32xf32> to vector<8x8xf32>
    "tpu.trace_start"() <{level = 10 : i32, message = "qd,kd->qk"}> : () -> ()
    %cst_38 = arith.constant dense<0.000000e+00> : vector<8x8xf32>
    %124 = tpu.matmul %121, %122, %cst_38 {dimension_numbers = #tpu.dot_dimension_numbers<[1], [1], [0], [0], [0, 0, 1, 0], [], []>} : vector<8x8xf32>, vector<8x8xf32>, vector<8x8xf32> -> vector<8x8xf32>
    "tpu.trace_stop"() : () -> ()
    %125 = arith.addf %124, %2 : vector<8x8xf32>
    %cst_39 = arith.constant dense<0xFF800000> : vector<8xf32>
    %126 = vector.multi_reduction <maximumf>, %125, %cst_39 [1] : vector<8x8xf32> to vector<8xf32>
    %127 = vector.shape_cast %126 : vector<8xf32> to vector<8x1xf32>
    %128 = vector.broadcast %127 : vector<8x1xf32> to vector<8x8xf32>
    %129 = arith.subf %125, %128 : vector<8x8xf32>
    %130 = math.exp %129 : vector<8x8xf32>
    %cst_40 = arith.constant dense<0.000000e+00> : vector<8xf32>
    %131 = vector.multi_reduction <add>, %130, %cst_40 [1] : vector<8x8xf32> to vector<8xf32>
    %132 = vector.shape_cast %131 : vector<8xf32> to vector<8x1xf32>
    %133 = tpu.reciprocal %132 {approx = true} : vector<8x1xf32> -> vector<8x1xf32>
    %134 = vector.broadcast %133 : vector<8x1xf32> to vector<8x8xf32>
    %135 = arith.mulf %130, %134 : vector<8x8xf32>
    %cst_41 = arith.constant dense<0.000000e+00> : vector<8x8xf32>
    %136 = tpu.matmul %135, %123, %cst_41 {dimension_numbers = #tpu.dot_dimension_numbers<[1], [0], [0], [1], [0, 0, 1, 1], [], []>} : vector<8x8xf32>, vector<8x8xf32>, vector<8x8xf32> -> vector<8x8xf32>
    %137 = vector.extract_strided_slice %102 {offsets = [0, 16], sizes = [8, 8], strides = [1, 1]} : vector<8x32xf32> to vector<8x8xf32>
    %138 = vector.extract_strided_slice %103 {offsets = [0, 16], sizes = [8, 8], strides = [1, 1]} : vector<8x32xf32> to vector<8x8xf32>
    %139 = vector.extract_strided_slice %104 {offsets = [0, 16], sizes = [8, 8], strides = [1, 1]} : vector<8x32xf32> to vector<8x8xf32>
    "tpu.trace_start"() <{level = 10 : i32, message = "qd,kd->qk"}> : () -> ()
    %cst_42 = arith.constant dense<0.000000e+00> : vector<8x8xf32>
    %140 = tpu.matmul %137, %138, %cst_42 {dimension_numbers = #tpu.dot_dimension_numbers<[1], [1], [0], [0], [0, 0, 1, 0], [], []>} : vector<8x8xf32>, vector<8x8xf32>, vector<8x8xf32> -> vector<8x8xf32>
    "tpu.trace_stop"() : () -> ()
    %141 = arith.addf %140, %2 : vector<8x8xf32>
    %cst_43 = arith.constant dense<0xFF800000> : vector<8xf32>
    %142 = vector.multi_reduction <maximumf>, %141, %cst_43 [1] : vector<8x8xf32> to vector<8xf32>
    %143 = vector.shape_cast %142 : vector<8xf32> to vector<8x1xf32>
    %144 = vector.broadcast %143 : vector<8x1xf32> to vector<8x8xf32>
    %145 = arith.subf %141, %144 : vector<8x8xf32>
    %146 = math.exp %145 : vector<8x8xf32>
    %cst_44 = arith.constant dense<0.000000e+00> : vector<8xf32>
    %147 = vector.multi_reduction <add>, %146, %cst_44 [1] : vector<8x8xf32> to vector<8xf32>
    %148 = vector.shape_cast %147 : vector<8xf32> to vector<8x1xf32>
    %149 = tpu.reciprocal %148 {approx = true} : vector<8x1xf32> -> vector<8x1xf32>
    %150 = vector.broadcast %149 : vector<8x1xf32> to vector<8x8xf32>
    %151 = arith.mulf %146, %150 : vector<8x8xf32>
    %cst_45 = arith.constant dense<0.000000e+00> : vector<8x8xf32>
    %152 = tpu.matmul %151, %139, %cst_45 {dimension_numbers = #tpu.dot_dimension_numbers<[1], [0], [0], [1], [0, 0, 1, 1], [], []>} : vector<8x8xf32>, vector<8x8xf32>, vector<8x8xf32> -> vector<8x8xf32>
    %153 = vector.extract_strided_slice %102 {offsets = [0, 24], sizes = [8, 8], strides = [1, 1]} : vector<8x32xf32> to vector<8x8xf32>
    %154 = vector.extract_strided_slice %103 {offsets = [0, 24], sizes = [8, 8], strides = [1, 1]} : vector<8x32xf32> to vector<8x8xf32>
    %155 = vector.extract_strided_slice %104 {offsets = [0, 24], sizes = [8, 8], strides = [1, 1]} : vector<8x32xf32> to vector<8x8xf32>
    "tpu.trace_start"() <{level = 10 : i32, message = "qd,kd->qk"}> : () -> ()
    %cst_46 = arith.constant dense<0.000000e+00> : vector<8x8xf32>
    %156 = tpu.matmul %153, %154, %cst_46 {dimension_numbers = #tpu.dot_dimension_numbers<[1], [1], [0], [0], [0, 0, 1, 0], [], []>} : vector<8x8xf32>, vector<8x8xf32>, vector<8x8xf32> -> vector<8x8xf32>
    "tpu.trace_stop"() : () -> ()
    %157 = arith.addf %156, %2 : vector<8x8xf32>
    %cst_47 = arith.constant dense<0xFF800000> : vector<8xf32>
    %158 = vector.multi_reduction <maximumf>, %157, %cst_47 [1] : vector<8x8xf32> to vector<8xf32>
    %159 = vector.shape_cast %158 : vector<8xf32> to vector<8x1xf32>
    %160 = vector.broadcast %159 : vector<8x1xf32> to vector<8x8xf32>
    %161 = arith.subf %157, %160 : vector<8x8xf32>
    %162 = math.exp %161 : vector<8x8xf32>
    %cst_48 = arith.constant dense<0.000000e+00> : vector<8xf32>
    %163 = vector.multi_reduction <add>, %162, %cst_48 [1] : vector<8x8xf32> to vector<8xf32>
    %164 = vector.shape_cast %163 : vector<8xf32> to vector<8x1xf32>
    %165 = tpu.reciprocal %164 {approx = true} : vector<8x1xf32> -> vector<8x1xf32>
    %166 = vector.broadcast %165 : vector<8x1xf32> to vector<8x8xf32>
    %167 = arith.mulf %162, %166 : vector<8x8xf32>
    %cst_49 = arith.constant dense<0.000000e+00> : vector<8x8xf32>
    %168 = tpu.matmul %167, %155, %cst_49 {dimension_numbers = #tpu.dot_dimension_numbers<[1], [0], [0], [1], [0, 0, 1, 1], [], []>} : vector<8x8xf32>, vector<8x8xf32>, vector<8x8xf32> -> vector<8x8xf32>
    %169 = tpu.concatenate %120, %136, %152, %168 in 1 : vector<8x8xf32>, vector<8x8xf32>, vector<8x8xf32>, vector<8x8xf32> -> vector<8x32xf32>
    %170 = tpu.concatenate %101, %169 in 0 : vector<8x32xf32>, vector<8x32xf32> -> vector<16x32xf32>
    %c0_50 = arith.constant 0 : index
    %c0_51 = arith.constant 0 : index
    %171 = vector.load %arg7[%c0_50, %c0_51] : memref<32x32xf32, #tpu.memory_space<vmem>>, vector<32x32xf32>
    %cst_52 = arith.constant dense<0.000000e+00> : vector<16x32xf32>
    %172 = tpu.matmul %170, %171, %cst_52 {dimension_numbers = #tpu.dot_dimension_numbers<[1], [0], [0], [1], [0, 0, 1, 1], [], []>} : vector<16x32xf32>, vector<32x32xf32>, vector<16x32xf32> -> vector<16x32xf32>
    %173 = arith.addf %0, %172 : vector<16x32xf32>
    %c1 = arith.constant 1 : index
    %c0_53 = arith.constant 0 : index
    %174 = vector.load %arg5[%c1, %c0_53] : memref<7x96xf32, #tpu.memory_space<vmem>>, vector<1x32xf32>
    %175 = vector.broadcast %174 : vector<1x32xf32> to vector<16x32xf32>
    %176 = arith.addf %173, %175 : vector<16x32xf32>
    %177 = vector.extract_strided_slice %4 {offsets = [2, 0], sizes = [1, 32], strides = [1, 1]} : vector<6x32xf32> to vector<1x32xf32>
    %178 = vector.extract_strided_slice %4 {offsets = [3, 0], sizes = [1, 32], strides = [1, 1]} : vector<6x32xf32> to vector<1x32xf32>
    %cst_54 = arith.constant dense<0.000000e+00> : vector<16xf32>
    %179 = vector.multi_reduction <add>, %176, %cst_54 [1] : vector<16x32xf32> to vector<16xf32>
    %180 = vector.shape_cast %179 : vector<16xf32> to vector<16x1xf32>
    %cst_55 = arith.constant 3.200000e+01 : f32
    %181 = vector.broadcast %cst_55 : f32 to vector<16x1xf32>
    %182 = arith.divf %180, %181 : vector<16x1xf32>
    %183 = vector.broadcast %182 : vector<16x1xf32> to vector<16x32xf32>
    %184 = arith.subf %176, %183 : vector<16x32xf32>
    %185 = arith.mulf %184, %184 : vector<16x32xf32>
    %cst_56 = arith.constant dense<0.000000e+00> : vector<16xf32>
    %186 = vector.multi_reduction <add>, %185, %cst_56 [1] : vector<16x32xf32> to vector<16xf32>
    %187 = vector.shape_cast %186 : vector<16xf32> to vector<16x1xf32>
    %cst_57 = arith.constant 3.200000e+01 : f32
    %188 = vector.broadcast %cst_57 : f32 to vector<16x1xf32>
    %189 = arith.divf %187, %188 : vector<16x1xf32>
    %190 = vector.broadcast %182 : vector<16x1xf32> to vector<16x32xf32>
    %191 = arith.subf %176, %190 : vector<16x32xf32>
    %cst_58 = arith.constant 9.99999997E-7 : f32
    %192 = vector.broadcast %cst_58 : f32 to vector<16x1xf32>
    %193 = arith.addf %189, %192 : vector<16x1xf32>
    %194 = math.rsqrt %193 : vector<16x1xf32>
    %195 = vector.broadcast %194 : vector<16x1xf32> to vector<16x32xf32>
    %196 = arith.mulf %191, %195 : vector<16x32xf32>
    %197 = vector.broadcast %177 : vector<1x32xf32> to vector<16x32xf32>
    %198 = arith.mulf %196, %197 : vector<16x32xf32>
    %199 = vector.broadcast %178 : vector<1x32xf32> to vector<16x32xf32>
    %200 = arith.addf %198, %199 : vector<16x32xf32>
    %c0_59 = arith.constant 0 : index
    %c0_60 = arith.constant 0 : index
    %201 = vector.load %arg8[%c0_59, %c0_60] : memref<32x32xf32, #tpu.memory_space<vmem>>, vector<32x32xf32>
    %cst_61 = arith.constant dense<0.000000e+00> : vector<16x32xf32>
    %202 = tpu.matmul %200, %201, %cst_61 {dimension_numbers = #tpu.dot_dimension_numbers<[1], [0], [0], [1], [0, 0, 1, 1], [], []>} : vector<16x32xf32>, vector<32x32xf32>, vector<16x32xf32> -> vector<16x32xf32>
    %c2 = arith.constant 2 : index
    %c0_62 = arith.constant 0 : index
    %203 = vector.load %arg5[%c2, %c0_62] : memref<7x96xf32, #tpu.memory_space<vmem>>, vector<1x32xf32>
    %204 = vector.broadcast %203 : vector<1x32xf32> to vector<16x32xf32>
    %205 = arith.addf %202, %204 : vector<16x32xf32>
    %c0_63 = arith.constant 0 : index
    %c0_64 = arith.constant 0 : index
    %206 = vector.load %arg9[%c0_63, %c0_64] : memref<32x64xf32, #tpu.memory_space<vmem>>, vector<32x64xf32>
    %cst_65 = arith.constant dense<0.000000e+00> : vector<32x64xf32>
    %207 = tpu.matmul %1, %206, %cst_65 {dimension_numbers = #tpu.dot_dimension_numbers<[1], [0], [0], [1], [0, 0, 1, 1], [], []>} : vector<32x32xf32>, vector<32x64xf32>, vector<32x64xf32> -> vector<32x64xf32>
    %c3 = arith.constant 3 : index
    %c0_66 = arith.constant 0 : index
    %208 = vector.load %arg5[%c3, %c0_66] : memref<7x96xf32, #tpu.memory_space<vmem>>, vector<1x64xf32>
    %209 = vector.broadcast %208 : vector<1x64xf32> to vector<32x64xf32>
    %210 = arith.addf %207, %209 : vector<32x64xf32>
    %211 = vector.extract_strided_slice %205 {offsets = [0, 0], sizes = [8, 32], strides = [1, 1]} : vector<16x32xf32> to vector<8x32xf32>
    %212 = vector.extract_strided_slice %210 {offsets = [0, 0], sizes = [16, 32], strides = [1, 1]} : vector<32x64xf32> to vector<16x32xf32>
    %213 = vector.extract_strided_slice %210 {offsets = [0, 32], sizes = [16, 32], strides = [1, 1]} : vector<32x64xf32> to vector<16x32xf32>
    %214 = vector.extract_strided_slice %3 {offsets = [0, 0], sizes = [1, 16], strides = [1, 1]} : vector<2x16xf32> to vector<1x16xf32>
    %215 = vector.extract_strided_slice %211 {offsets = [0, 0], sizes = [8, 8], strides = [1, 1]} : vector<8x32xf32> to vector<8x8xf32>
    %216 = vector.extract_strided_slice %212 {offsets = [0, 0], sizes = [16, 8], strides = [1, 1]} : vector<16x32xf32> to vector<16x8xf32>
    %217 = vector.extract_strided_slice %213 {offsets = [0, 0], sizes = [16, 8], strides = [1, 1]} : vector<16x32xf32> to vector<16x8xf32>
    "tpu.trace_start"() <{level = 10 : i32, message = "qd,kd->qk"}> : () -> ()
    %cst_67 = arith.constant dense<0.000000e+00> : vector<8x16xf32>
    %218 = tpu.matmul %215, %216, %cst_67 {dimension_numbers = #tpu.dot_dimension_numbers<[1], [1], [0], [0], [0, 0, 1, 0], [], []>} : vector<8x8xf32>, vector<16x8xf32>, vector<8x16xf32> -> vector<8x16xf32>
    "tpu.trace_stop"() : () -> ()
    %219 = vector.broadcast %214 : vector<1x16xf32> to vector<8x16xf32>
    %220 = arith.addf %218, %219 : vector<8x16xf32>
    %cst_68 = arith.constant dense<0xFF800000> : vector<8xf32>
    %221 = vector.multi_reduction <maximumf>, %220, %cst_68 [1] : vector<8x16xf32> to vector<8xf32>
    %222 = vector.shape_cast %221 : vector<8xf32> to vector<8x1xf32>
    %223 = vector.broadcast %222 : vector<8x1xf32> to vector<8x16xf32>
    %224 = arith.subf %220, %223 : vector<8x16xf32>
    %225 = math.exp %224 : vector<8x16xf32>
    %cst_69 = arith.constant dense<0.000000e+00> : vector<8xf32>
    %226 = vector.multi_reduction <add>, %225, %cst_69 [1] : vector<8x16xf32> to vector<8xf32>
    %227 = vector.shape_cast %226 : vector<8xf32> to vector<8x1xf32>
    %228 = tpu.reciprocal %227 {approx = true} : vector<8x1xf32> -> vector<8x1xf32>
    %229 = vector.broadcast %228 : vector<8x1xf32> to vector<8x16xf32>
    %230 = arith.mulf %225, %229 : vector<8x16xf32>
    %cst_70 = arith.constant dense<0.000000e+00> : vector<8x8xf32>
    %231 = tpu.matmul %230, %217, %cst_70 {dimension_numbers = #tpu.dot_dimension_numbers<[1], [0], [0], [1], [0, 0, 1, 1], [], []>} : vector<8x16xf32>, vector<16x8xf32>, vector<8x8xf32> -> vector<8x8xf32>
    %232 = vector.extract_strided_slice %211 {offsets = [0, 8], sizes = [8, 8], strides = [1, 1]} : vector<8x32xf32> to vector<8x8xf32>
    %233 = vector.extract_strided_slice %212 {offsets = [0, 8], sizes = [16, 8], strides = [1, 1]} : vector<16x32xf32> to vector<16x8xf32>
    %234 = vector.extract_strided_slice %213 {offsets = [0, 8], sizes = [16, 8], strides = [1, 1]} : vector<16x32xf32> to vector<16x8xf32>
    "tpu.trace_start"() <{level = 10 : i32, message = "qd,kd->qk"}> : () -> ()
    %cst_71 = arith.constant dense<0.000000e+00> : vector<8x16xf32>
    %235 = tpu.matmul %232, %233, %cst_71 {dimension_numbers = #tpu.dot_dimension_numbers<[1], [1], [0], [0], [0, 0, 1, 0], [], []>} : vector<8x8xf32>, vector<16x8xf32>, vector<8x16xf32> -> vector<8x16xf32>
    "tpu.trace_stop"() : () -> ()
    %236 = vector.broadcast %214 : vector<1x16xf32> to vector<8x16xf32>
    %237 = arith.addf %235, %236 : vector<8x16xf32>
    %cst_72 = arith.constant dense<0xFF800000> : vector<8xf32>
    %238 = vector.multi_reduction <maximumf>, %237, %cst_72 [1] : vector<8x16xf32> to vector<8xf32>
    %239 = vector.shape_cast %238 : vector<8xf32> to vector<8x1xf32>
    %240 = vector.broadcast %239 : vector<8x1xf32> to vector<8x16xf32>
    %241 = arith.subf %237, %240 : vector<8x16xf32>
    %242 = math.exp %241 : vector<8x16xf32>
    %cst_73 = arith.constant dense<0.000000e+00> : vector<8xf32>
    %243 = vector.multi_reduction <add>, %242, %cst_73 [1] : vector<8x16xf32> to vector<8xf32>
    %244 = vector.shape_cast %243 : vector<8xf32> to vector<8x1xf32>
    %245 = tpu.reciprocal %244 {approx = true} : vector<8x1xf32> -> vector<8x1xf32>
    %246 = vector.broadcast %245 : vector<8x1xf32> to vector<8x16xf32>
    %247 = arith.mulf %242, %246 : vector<8x16xf32>
    %cst_74 = arith.constant dense<0.000000e+00> : vector<8x8xf32>
    %248 = tpu.matmul %247, %234, %cst_74 {dimension_numbers = #tpu.dot_dimension_numbers<[1], [0], [0], [1], [0, 0, 1, 1], [], []>} : vector<8x16xf32>, vector<16x8xf32>, vector<8x8xf32> -> vector<8x8xf32>
    %249 = vector.extract_strided_slice %211 {offsets = [0, 16], sizes = [8, 8], strides = [1, 1]} : vector<8x32xf32> to vector<8x8xf32>
    %250 = vector.extract_strided_slice %212 {offsets = [0, 16], sizes = [16, 8], strides = [1, 1]} : vector<16x32xf32> to vector<16x8xf32>
    %251 = vector.extract_strided_slice %213 {offsets = [0, 16], sizes = [16, 8], strides = [1, 1]} : vector<16x32xf32> to vector<16x8xf32>
    "tpu.trace_start"() <{level = 10 : i32, message = "qd,kd->qk"}> : () -> ()
    %cst_75 = arith.constant dense<0.000000e+00> : vector<8x16xf32>
    %252 = tpu.matmul %249, %250, %cst_75 {dimension_numbers = #tpu.dot_dimension_numbers<[1], [1], [0], [0], [0, 0, 1, 0], [], []>} : vector<8x8xf32>, vector<16x8xf32>, vector<8x16xf32> -> vector<8x16xf32>
    "tpu.trace_stop"() : () -> ()
    %253 = vector.broadcast %214 : vector<1x16xf32> to vector<8x16xf32>
    %254 = arith.addf %252, %253 : vector<8x16xf32>
    %cst_76 = arith.constant dense<0xFF800000> : vector<8xf32>
    %255 = vector.multi_reduction <maximumf>, %254, %cst_76 [1] : vector<8x16xf32> to vector<8xf32>
    %256 = vector.shape_cast %255 : vector<8xf32> to vector<8x1xf32>
    %257 = vector.broadcast %256 : vector<8x1xf32> to vector<8x16xf32>
    %258 = arith.subf %254, %257 : vector<8x16xf32>
    %259 = math.exp %258 : vector<8x16xf32>
    %cst_77 = arith.constant dense<0.000000e+00> : vector<8xf32>
    %260 = vector.multi_reduction <add>, %259, %cst_77 [1] : vector<8x16xf32> to vector<8xf32>
    %261 = vector.shape_cast %260 : vector<8xf32> to vector<8x1xf32>
    %262 = tpu.reciprocal %261 {approx = true} : vector<8x1xf32> -> vector<8x1xf32>
    %263 = vector.broadcast %262 : vector<8x1xf32> to vector<8x16xf32>
    %264 = arith.mulf %259, %263 : vector<8x16xf32>
    %cst_78 = arith.constant dense<0.000000e+00> : vector<8x8xf32>
    %265 = tpu.matmul %264, %251, %cst_78 {dimension_numbers = #tpu.dot_dimension_numbers<[1], [0], [0], [1], [0, 0, 1, 1], [], []>} : vector<8x16xf32>, vector<16x8xf32>, vector<8x8xf32> -> vector<8x8xf32>
    %266 = vector.extract_strided_slice %211 {offsets = [0, 24], sizes = [8, 8], strides = [1, 1]} : vector<8x32xf32> to vector<8x8xf32>
    %267 = vector.extract_strided_slice %212 {offsets = [0, 24], sizes = [16, 8], strides = [1, 1]} : vector<16x32xf32> to vector<16x8xf32>
    %268 = vector.extract_strided_slice %213 {offsets = [0, 24], sizes = [16, 8], strides = [1, 1]} : vector<16x32xf32> to vector<16x8xf32>
    "tpu.trace_start"() <{level = 10 : i32, message = "qd,kd->qk"}> : () -> ()
    %cst_79 = arith.constant dense<0.000000e+00> : vector<8x16xf32>
    %269 = tpu.matmul %266, %267, %cst_79 {dimension_numbers = #tpu.dot_dimension_numbers<[1], [1], [0], [0], [0, 0, 1, 0], [], []>} : vector<8x8xf32>, vector<16x8xf32>, vector<8x16xf32> -> vector<8x16xf32>
    "tpu.trace_stop"() : () -> ()
    %270 = vector.broadcast %214 : vector<1x16xf32> to vector<8x16xf32>
    %271 = arith.addf %269, %270 : vector<8x16xf32>
    %cst_80 = arith.constant dense<0xFF800000> : vector<8xf32>
    %272 = vector.multi_reduction <maximumf>, %271, %cst_80 [1] : vector<8x16xf32> to vector<8xf32>
    %273 = vector.shape_cast %272 : vector<8xf32> to vector<8x1xf32>
    %274 = vector.broadcast %273 : vector<8x1xf32> to vector<8x16xf32>
    %275 = arith.subf %271, %274 : vector<8x16xf32>
    %276 = math.exp %275 : vector<8x16xf32>
    %cst_81 = arith.constant dense<0.000000e+00> : vector<8xf32>
    %277 = vector.multi_reduction <add>, %276, %cst_81 [1] : vector<8x16xf32> to vector<8xf32>
    %278 = vector.shape_cast %277 : vector<8xf32> to vector<8x1xf32>
    %279 = tpu.reciprocal %278 {approx = true} : vector<8x1xf32> -> vector<8x1xf32>
    %280 = vector.broadcast %279 : vector<8x1xf32> to vector<8x16xf32>
    %281 = arith.mulf %276, %280 : vector<8x16xf32>
    %cst_82 = arith.constant dense<0.000000e+00> : vector<8x8xf32>
    %282 = tpu.matmul %281, %268, %cst_82 {dimension_numbers = #tpu.dot_dimension_numbers<[1], [0], [0], [1], [0, 0, 1, 1], [], []>} : vector<8x16xf32>, vector<16x8xf32>, vector<8x8xf32> -> vector<8x8xf32>
    %283 = tpu.concatenate %231, %248, %265, %282 in 1 : vector<8x8xf32>, vector<8x8xf32>, vector<8x8xf32>, vector<8x8xf32> -> vector<8x32xf32>
    %284 = vector.extract_strided_slice %205 {offsets = [8, 0], sizes = [8, 32], strides = [1, 1]} : vector<16x32xf32> to vector<8x32xf32>
    %285 = vector.extract_strided_slice %210 {offsets = [16, 0], sizes = [16, 32], strides = [1, 1]} : vector<32x64xf32> to vector<16x32xf32>
    %286 = vector.extract_strided_slice %210 {offsets = [16, 32], sizes = [16, 32], strides = [1, 1]} : vector<32x64xf32> to vector<16x32xf32>
    %287 = vector.extract_strided_slice %3 {offsets = [1, 0], sizes = [1, 16], strides = [1, 1]} : vector<2x16xf32> to vector<1x16xf32>
    %288 = vector.extract_strided_slice %284 {offsets = [0, 0], sizes = [8, 8], strides = [1, 1]} : vector<8x32xf32> to vector<8x8xf32>
    %289 = vector.extract_strided_slice %285 {offsets = [0, 0], sizes = [16, 8], strides = [1, 1]} : vector<16x32xf32> to vector<16x8xf32>
    %290 = vector.extract_strided_slice %286 {offsets = [0, 0], sizes = [16, 8], strides = [1, 1]} : vector<16x32xf32> to vector<16x8xf32>
    "tpu.trace_start"() <{level = 10 : i32, message = "qd,kd->qk"}> : () -> ()
    %cst_83 = arith.constant dense<0.000000e+00> : vector<8x16xf32>
    %291 = tpu.matmul %288, %289, %cst_83 {dimension_numbers = #tpu.dot_dimension_numbers<[1], [1], [0], [0], [0, 0, 1, 0], [], []>} : vector<8x8xf32>, vector<16x8xf32>, vector<8x16xf32> -> vector<8x16xf32>
    "tpu.trace_stop"() : () -> ()
    %292 = vector.broadcast %287 : vector<1x16xf32> to vector<8x16xf32>
    %293 = arith.addf %291, %292 : vector<8x16xf32>
    %cst_84 = arith.constant dense<0xFF800000> : vector<8xf32>
    %294 = vector.multi_reduction <maximumf>, %293, %cst_84 [1] : vector<8x16xf32> to vector<8xf32>
    %295 = vector.shape_cast %294 : vector<8xf32> to vector<8x1xf32>
    %296 = vector.broadcast %295 : vector<8x1xf32> to vector<8x16xf32>
    %297 = arith.subf %293, %296 : vector<8x16xf32>
    %298 = math.exp %297 : vector<8x16xf32>
    %cst_85 = arith.constant dense<0.000000e+00> : vector<8xf32>
    %299 = vector.multi_reduction <add>, %298, %cst_85 [1] : vector<8x16xf32> to vector<8xf32>
    %300 = vector.shape_cast %299 : vector<8xf32> to vector<8x1xf32>
    %301 = tpu.reciprocal %300 {approx = true} : vector<8x1xf32> -> vector<8x1xf32>
    %302 = vector.broadcast %301 : vector<8x1xf32> to vector<8x16xf32>
    %303 = arith.mulf %298, %302 : vector<8x16xf32>
    %cst_86 = arith.constant dense<0.000000e+00> : vector<8x8xf32>
    %304 = tpu.matmul %303, %290, %cst_86 {dimension_numbers = #tpu.dot_dimension_numbers<[1], [0], [0], [1], [0, 0, 1, 1], [], []>} : vector<8x16xf32>, vector<16x8xf32>, vector<8x8xf32> -> vector<8x8xf32>
    %305 = vector.extract_strided_slice %284 {offsets = [0, 8], sizes = [8, 8], strides = [1, 1]} : vector<8x32xf32> to vector<8x8xf32>
    %306 = vector.extract_strided_slice %285 {offsets = [0, 8], sizes = [16, 8], strides = [1, 1]} : vector<16x32xf32> to vector<16x8xf32>
    %307 = vector.extract_strided_slice %286 {offsets = [0, 8], sizes = [16, 8], strides = [1, 1]} : vector<16x32xf32> to vector<16x8xf32>
    "tpu.trace_start"() <{level = 10 : i32, message = "qd,kd->qk"}> : () -> ()
    %cst_87 = arith.constant dense<0.000000e+00> : vector<8x16xf32>
    %308 = tpu.matmul %305, %306, %cst_87 {dimension_numbers = #tpu.dot_dimension_numbers<[1], [1], [0], [0], [0, 0, 1, 0], [], []>} : vector<8x8xf32>, vector<16x8xf32>, vector<8x16xf32> -> vector<8x16xf32>
    "tpu.trace_stop"() : () -> ()
    %309 = vector.broadcast %287 : vector<1x16xf32> to vector<8x16xf32>
    %310 = arith.addf %308, %309 : vector<8x16xf32>
    %cst_88 = arith.constant dense<0xFF800000> : vector<8xf32>
    %311 = vector.multi_reduction <maximumf>, %310, %cst_88 [1] : vector<8x16xf32> to vector<8xf32>
    %312 = vector.shape_cast %311 : vector<8xf32> to vector<8x1xf32>
    %313 = vector.broadcast %312 : vector<8x1xf32> to vector<8x16xf32>
    %314 = arith.subf %310, %313 : vector<8x16xf32>
    %315 = math.exp %314 : vector<8x16xf32>
    %cst_89 = arith.constant dense<0.000000e+00> : vector<8xf32>
    %316 = vector.multi_reduction <add>, %315, %cst_89 [1] : vector<8x16xf32> to vector<8xf32>
    %317 = vector.shape_cast %316 : vector<8xf32> to vector<8x1xf32>
    %318 = tpu.reciprocal %317 {approx = true} : vector<8x1xf32> -> vector<8x1xf32>
    %319 = vector.broadcast %318 : vector<8x1xf32> to vector<8x16xf32>
    %320 = arith.mulf %315, %319 : vector<8x16xf32>
    %cst_90 = arith.constant dense<0.000000e+00> : vector<8x8xf32>
    %321 = tpu.matmul %320, %307, %cst_90 {dimension_numbers = #tpu.dot_dimension_numbers<[1], [0], [0], [1], [0, 0, 1, 1], [], []>} : vector<8x16xf32>, vector<16x8xf32>, vector<8x8xf32> -> vector<8x8xf32>
    %322 = vector.extract_strided_slice %284 {offsets = [0, 16], sizes = [8, 8], strides = [1, 1]} : vector<8x32xf32> to vector<8x8xf32>
    %323 = vector.extract_strided_slice %285 {offsets = [0, 16], sizes = [16, 8], strides = [1, 1]} : vector<16x32xf32> to vector<16x8xf32>
    %324 = vector.extract_strided_slice %286 {offsets = [0, 16], sizes = [16, 8], strides = [1, 1]} : vector<16x32xf32> to vector<16x8xf32>
    "tpu.trace_start"() <{level = 10 : i32, message = "qd,kd->qk"}> : () -> ()
    %cst_91 = arith.constant dense<0.000000e+00> : vector<8x16xf32>
    %325 = tpu.matmul %322, %323, %cst_91 {dimension_numbers = #tpu.dot_dimension_numbers<[1], [1], [0], [0], [0, 0, 1, 0], [], []>} : vector<8x8xf32>, vector<16x8xf32>, vector<8x16xf32> -> vector<8x16xf32>
    "tpu.trace_stop"() : () -> ()
    %326 = vector.broadcast %287 : vector<1x16xf32> to vector<8x16xf32>
    %327 = arith.addf %325, %326 : vector<8x16xf32>
    %cst_92 = arith.constant dense<0xFF800000> : vector<8xf32>
    %328 = vector.multi_reduction <maximumf>, %327, %cst_92 [1] : vector<8x16xf32> to vector<8xf32>
    %329 = vector.shape_cast %328 : vector<8xf32> to vector<8x1xf32>
    %330 = vector.broadcast %329 : vector<8x1xf32> to vector<8x16xf32>
    %331 = arith.subf %327, %330 : vector<8x16xf32>
    %332 = math.exp %331 : vector<8x16xf32>
    %cst_93 = arith.constant dense<0.000000e+00> : vector<8xf32>
    %333 = vector.multi_reduction <add>, %332, %cst_93 [1] : vector<8x16xf32> to vector<8xf32>
    %334 = vector.shape_cast %333 : vector<8xf32> to vector<8x1xf32>
    %335 = tpu.reciprocal %334 {approx = true} : vector<8x1xf32> -> vector<8x1xf32>
    %336 = vector.broadcast %335 : vector<8x1xf32> to vector<8x16xf32>
    %337 = arith.mulf %332, %336 : vector<8x16xf32>
    %cst_94 = arith.constant dense<0.000000e+00> : vector<8x8xf32>
    %338 = tpu.matmul %337, %324, %cst_94 {dimension_numbers = #tpu.dot_dimension_numbers<[1], [0], [0], [1], [0, 0, 1, 1], [], []>} : vector<8x16xf32>, vector<16x8xf32>, vector<8x8xf32> -> vector<8x8xf32>
    %339 = vector.extract_strided_slice %284 {offsets = [0, 24], sizes = [8, 8], strides = [1, 1]} : vector<8x32xf32> to vector<8x8xf32>
    %340 = vector.extract_strided_slice %285 {offsets = [0, 24], sizes = [16, 8], strides = [1, 1]} : vector<16x32xf32> to vector<16x8xf32>
    %341 = vector.extract_strided_slice %286 {offsets = [0, 24], sizes = [16, 8], strides = [1, 1]} : vector<16x32xf32> to vector<16x8xf32>
    "tpu.trace_start"() <{level = 10 : i32, message = "qd,kd->qk"}> : () -> ()
    %cst_95 = arith.constant dense<0.000000e+00> : vector<8x16xf32>
    %342 = tpu.matmul %339, %340, %cst_95 {dimension_numbers = #tpu.dot_dimension_numbers<[1], [1], [0], [0], [0, 0, 1, 0], [], []>} : vector<8x8xf32>, vector<16x8xf32>, vector<8x16xf32> -> vector<8x16xf32>
    "tpu.trace_stop"() : () -> ()
    %343 = vector.broadcast %287 : vector<1x16xf32> to vector<8x16xf32>
    %344 = arith.addf %342, %343 : vector<8x16xf32>
    %cst_96 = arith.constant dense<0xFF800000> : vector<8xf32>
    %345 = vector.multi_reduction <maximumf>, %344, %cst_96 [1] : vector<8x16xf32> to vector<8xf32>
    %346 = vector.shape_cast %345 : vector<8xf32> to vector<8x1xf32>
    %347 = vector.broadcast %346 : vector<8x1xf32> to vector<8x16xf32>
    %348 = arith.subf %344, %347 : vector<8x16xf32>
    %349 = math.exp %348 : vector<8x16xf32>
    %cst_97 = arith.constant dense<0.000000e+00> : vector<8xf32>
    %350 = vector.multi_reduction <add>, %349, %cst_97 [1] : vector<8x16xf32> to vector<8xf32>
    %351 = vector.shape_cast %350 : vector<8xf32> to vector<8x1xf32>
    %352 = tpu.reciprocal %351 {approx = true} : vector<8x1xf32> -> vector<8x1xf32>
    %353 = vector.broadcast %352 : vector<8x1xf32> to vector<8x16xf32>
    %354 = arith.mulf %349, %353 : vector<8x16xf32>
    %cst_98 = arith.constant dense<0.000000e+00> : vector<8x8xf32>
    %355 = tpu.matmul %354, %341, %cst_98 {dimension_numbers = #tpu.dot_dimension_numbers<[1], [0], [0], [1], [0, 0, 1, 1], [], []>} : vector<8x16xf32>, vector<16x8xf32>, vector<8x8xf32> -> vector<8x8xf32>
    %356 = tpu.concatenate %304, %321, %338, %355 in 1 : vector<8x8xf32>, vector<8x8xf32>, vector<8x8xf32>, vector<8x8xf32> -> vector<8x32xf32>
    %357 = tpu.concatenate %283, %356 in 0 : vector<8x32xf32>, vector<8x32xf32> -> vector<16x32xf32>
    %c0_99 = arith.constant 0 : index
    %c0_100 = arith.constant 0 : index
    %358 = vector.load %arg10[%c0_99, %c0_100] : memref<32x32xf32, #tpu.memory_space<vmem>>, vector<32x32xf32>
    %cst_101 = arith.constant dense<0.000000e+00> : vector<16x32xf32>
    %359 = tpu.matmul %357, %358, %cst_101 {dimension_numbers = #tpu.dot_dimension_numbers<[1], [0], [0], [1], [0, 0, 1, 1], [], []>} : vector<16x32xf32>, vector<32x32xf32>, vector<16x32xf32> -> vector<16x32xf32>
    %360 = arith.addf %176, %359 : vector<16x32xf32>
    %c4 = arith.constant 4 : index
    %c0_102 = arith.constant 0 : index
    %361 = vector.load %arg5[%c4, %c0_102] : memref<7x96xf32, #tpu.memory_space<vmem>>, vector<1x32xf32>
    %362 = vector.broadcast %361 : vector<1x32xf32> to vector<16x32xf32>
    %363 = arith.addf %360, %362 : vector<16x32xf32>
    %364 = vector.extract_strided_slice %4 {offsets = [4, 0], sizes = [1, 32], strides = [1, 1]} : vector<6x32xf32> to vector<1x32xf32>
    %365 = vector.extract_strided_slice %4 {offsets = [5, 0], sizes = [1, 32], strides = [1, 1]} : vector<6x32xf32> to vector<1x32xf32>
    %cst_103 = arith.constant dense<0.000000e+00> : vector<16xf32>
    %366 = vector.multi_reduction <add>, %363, %cst_103 [1] : vector<16x32xf32> to vector<16xf32>
    %367 = vector.shape_cast %366 : vector<16xf32> to vector<16x1xf32>
    %cst_104 = arith.constant 3.200000e+01 : f32
    %368 = vector.broadcast %cst_104 : f32 to vector<16x1xf32>
    %369 = arith.divf %367, %368 : vector<16x1xf32>
    %370 = vector.broadcast %369 : vector<16x1xf32> to vector<16x32xf32>
    %371 = arith.subf %363, %370 : vector<16x32xf32>
    %372 = arith.mulf %371, %371 : vector<16x32xf32>
    %cst_105 = arith.constant dense<0.000000e+00> : vector<16xf32>
    %373 = vector.multi_reduction <add>, %372, %cst_105 [1] : vector<16x32xf32> to vector<16xf32>
    %374 = vector.shape_cast %373 : vector<16xf32> to vector<16x1xf32>
    %cst_106 = arith.constant 3.200000e+01 : f32
    %375 = vector.broadcast %cst_106 : f32 to vector<16x1xf32>
    %376 = arith.divf %374, %375 : vector<16x1xf32>
    %377 = vector.broadcast %369 : vector<16x1xf32> to vector<16x32xf32>
    %378 = arith.subf %363, %377 : vector<16x32xf32>
    %cst_107 = arith.constant 9.99999997E-7 : f32
    %379 = vector.broadcast %cst_107 : f32 to vector<16x1xf32>
    %380 = arith.addf %376, %379 : vector<16x1xf32>
    %381 = math.rsqrt %380 : vector<16x1xf32>
    %382 = vector.broadcast %381 : vector<16x1xf32> to vector<16x32xf32>
    %383 = arith.mulf %378, %382 : vector<16x32xf32>
    %384 = vector.broadcast %364 : vector<1x32xf32> to vector<16x32xf32>
    %385 = arith.mulf %383, %384 : vector<16x32xf32>
    %386 = vector.broadcast %365 : vector<1x32xf32> to vector<16x32xf32>
    %387 = arith.addf %385, %386 : vector<16x32xf32>
    %c0_108 = arith.constant 0 : index
    %c0_109 = arith.constant 0 : index
    %388 = vector.load %arg11[%c0_108, %c0_109] : memref<32x64xf32, #tpu.memory_space<vmem>>, vector<32x64xf32>
    %cst_110 = arith.constant dense<0.000000e+00> : vector<16x64xf32>
    %389 = tpu.matmul %387, %388, %cst_110 {dimension_numbers = #tpu.dot_dimension_numbers<[1], [0], [0], [1], [0, 0, 1, 1], [], []>} : vector<16x32xf32>, vector<32x64xf32>, vector<16x64xf32> -> vector<16x64xf32>
    %c5 = arith.constant 5 : index
    %c0_111 = arith.constant 0 : index
    %390 = vector.load %arg5[%c5, %c0_111] : memref<7x96xf32, #tpu.memory_space<vmem>>, vector<1x64xf32>
    %391 = vector.broadcast %390 : vector<1x64xf32> to vector<16x64xf32>
    %392 = arith.addf %389, %391 : vector<16x64xf32>
    %cst_112 = arith.constant 0.000000e+00 : f32
    %393 = vector.broadcast %cst_112 : f32 to vector<16x64xf32>
    %394 = arith.maximumf %392, %393 : vector<16x64xf32>
    %c0_113 = arith.constant 0 : index
    %c0_114 = arith.constant 0 : index
    %395 = vector.load %arg12[%c0_113, %c0_114] : memref<64x32xf32, #tpu.memory_space<vmem>>, vector<64x32xf32>
    %cst_115 = arith.constant dense<0.000000e+00> : vector<16x32xf32>
    %396 = tpu.matmul %394, %395, %cst_115 {dimension_numbers = #tpu.dot_dimension_numbers<[1], [0], [0], [1], [0, 0, 1, 1], [], []>} : vector<16x64xf32>, vector<64x32xf32>, vector<16x32xf32> -> vector<16x32xf32>
    %c6 = arith.constant 6 : index
    %c0_116 = arith.constant 0 : index
    %397 = vector.load %arg5[%c6, %c0_116] : memref<7x96xf32, #tpu.memory_space<vmem>>, vector<1x32xf32>
    %398 = vector.broadcast %397 : vector<1x32xf32> to vector<16x32xf32>
    %399 = arith.addf %396, %398 : vector<16x32xf32>
    %400 = arith.addf %363, %399 : vector<16x32xf32>
    %c0_117 = arith.constant 0 : index
    %c0_118 = arith.constant 0 : index
    %401 = vector.load %arg13[%c0_117, %c0_118] : memref<16x32xf32, #tpu.memory_space<vmem>>, vector<16x32xf32>
    tpu.vector_store %arg13[%c0_117, %c0_118], %400 {strides = array<i32>} : memref<16x32xf32, #tpu.memory_space<vmem>>, vector<16x32xf32>,
    return
  }
}

</mosaic_0001>

<llo_original>
// kernel: tpu_custom_call.1
$region0: #{tpu_custom_call.1}
  #allocation0 [shape = 'u32[]', space=smem, size = 0x4, offset = 0x4, fixed_abs, tag = 'smem constant byte address 0x4 - core index']
  #allocation1 [shape = 'u32[72,128]{1,0:T(1,128)}', space=vmem, size = 0x9000, scoped, tag = 'internal scratch']
  %s0 = inlined_call_operand.hbm [shape: f32[16,32], index: 0, kind: input, shape index: {}]
  %s1 = inlined_call_operand.vmem [shape: f32[32,32], index: 1, kind: input, shape index: {}]
  %s2 = inlined_call_operand.hbm [shape: f32[8,8], index: 2, kind: input, shape index: {}]
  %s3 = inlined_call_operand.hbm [shape: f32[2,16], index: 3, kind: input, shape index: {}]
  %s4 = inlined_call_operand.hbm [shape: f32[6,32], index: 4, kind: input, shape index: {}]
  %s5 = inlined_call_operand.hbm [shape: f32[7,96], index: 5, kind: input, shape index: {}]
  %s6 = inlined_call_operand.vmem [shape: f32[32,96], index: 6, kind: input, shape index: {}]
  %s7 = inlined_call_operand.vmem [shape: f32[32,32], index: 7, kind: input, shape index: {}]
  %s8 = inlined_call_operand.hbm [shape: f32[32,32], index: 8, kind: input, shape index: {}]
  %s9 = inlined_call_operand.hbm [shape: f32[32,64], index: 9, kind: input, shape index: {}]
  %s10 = inlined_call_operand.hbm [shape: f32[32,32], index: 10, kind: input, shape index: {}]
  %s11 = inlined_call_operand.hbm [shape: f32[32,64], index: 11, kind: input, shape index: {}]
  %s12 = inlined_call_operand.vmem [shape: f32[64,32], index: 12, kind: input, shape index: {}]
  %s13 = inlined_call_operand.hbm [shape: f32[16,32], index: 13, kind: output, shape index: {}]
  %s14 = sld [smem:[#allocation0]]
  $region98: #{tpu_custom_call.1} parent=0
    _
  %s16 = ssub.s32 1, %s14
  %s17 = scalar_select 0, %s16, %s14
  $region1: #{tpu_custom_call.1} parent=0
    #allocation2 [shape = 'u8[8192]{0}', space=vmem, size = 0x2000, scoped, tag = 'input window, operand 0, single buffered']
    #allocation3 [shape = 's32[1]{0}', space=sflag, size = 0x4, scoped, tag = 'scoped memory for tpu_custom_call.1']
    #allocation4 [shape = 's32[1]{0}', space=sflag, size = 0x4, scoped, tag = 'scoped memory for tpu_custom_call.1']
    #allocation5 [shape = 'u8[4096]{0}', space=vmem, size = 0x1000, scoped, tag = 'input window, operand 2, single buffered']
    #allocation6 [shape = 's32[1]{0}', space=sflag, size = 0x4, scoped, tag = 'scoped memory for tpu_custom_call.1']
    #allocation7 [shape = 'u8[1024]{0}', space=vmem, size = 0x400, scoped, tag = 'input window, operand 3, single buffered']
    #allocation8 [shape = 'u8[4096]{0}', space=vmem, size = 0x1000, scoped, tag = 'input window, operand 4, single buffered']
    #allocation9 [shape = 's32[1]{0}', space=sflag, size = 0x4, scoped, tag = 'scoped memory for tpu_custom_call.1']
    #allocation10 [shape = 'u8[4096]{0}', space=vmem, size = 0x1000, scoped, tag = 'input window, operand 5, single buffered']
    #allocation11 [shape = 'u8[16384]{0}', space=vmem, size = 0x4000, scoped, tag = 'input window, operand 8, single buffered']
    #allocation12 [shape = 's32[1]{0}', space=sflag, size = 0x4, scoped, tag = 'scoped memory for tpu_custom_call.1']
    #allocation13 [shape = 'u8[16384]{0}', space=vmem, size = 0x4000, scoped, tag = 'input window, operand 9, single buffered']
    #allocation14 [shape = 'u8[16384]{0}', space=vmem, size = 0x4000, scoped, tag = 'input window, operand 10, single buffered']
    #allocation15 [shape = 's32[1]{0}', space=sflag, size = 0x4, scoped, tag = 'scoped memory for tpu_custom_call.1']
    #allocation16 [shape = 'u8[16384]{0}', space=vmem, size = 0x4000, scoped, tag = 'input window, operand 11, single buffered']
    #allocation17 [shape = 'u8[8192]{0}', space=vmem, size = 0x2000, scoped, tag = 'output window, operand 0, single buffered']
    %18 = vsyncpa [#allocation3], 0
    %19 = vsyncpa [#allocation6], 0
    %20 = vsyncpa [#allocation9], 0
    %21 = vsyncpa [#allocation12], 0
    %22 = vsyncpa [#allocation15], 0
    %23 = vsyncpa [#allocation4], 0
    // Predicated region
    $region2: #{tpu_custom_call.1} parent=1 // pred_check
      _
    $region3: #{tpu_custom_call.1} parent=1 // pred_check_branch
      %25 = sbr.rel (0) target = $region5
    $region4: #{tpu_custom_call.1} parent=1 // pred_region
      %27 = vsyncadd [#allocation3], 0
      %s28 = sshll.u32 %s0, 4
      %s29 = int_to_ptr.hbm [resolvable:$true] %s28
      %s30 = sshll.u32 [#allocation2], 4
      %s31 = int_to_ptr.vmem [resolvable:$true] %s30
      %36 = dma.hbm_to_vmem [thread:$0]  %s29, 256, %s31, [#allocation3], 128, 128, 8
    $region5: #{tpu_custom_call.1} parent=1 // pred_fallthru
      _
    // Predicated region
    $region6: #{tpu_custom_call.1} parent=1 // pred_check
      _
    $region7: #{tpu_custom_call.1} parent=1 // pred_check_branch
      %38 = sbr.rel (0) target = $region9
    $region8: #{tpu_custom_call.1} parent=1 // pred_region
      _
    $region9: #{tpu_custom_call.1} parent=1 // pred_fallthru
      _
    // Predicated region
    $region10: #{tpu_custom_call.1} parent=1 // pred_check
      _
    $region11: #{tpu_custom_call.1} parent=1 // pred_check_branch
      %40 = sbr.rel (0) target = $region13
    $region12: #{tpu_custom_call.1} parent=1 // pred_region
      %42 = vsyncadd [#allocation6], 0
      %s44 = sshll.u32 %s2, 4
      %s45 = int_to_ptr.hbm [resolvable:$true] %s44
      %s46 = sshll.u32 [#allocation5], 4
      %s47 = int_to_ptr.vmem [resolvable:$true] %s46
      %49 = dma.hbm_to_vmem [thread:$0]  %s45, 128, %s47, [#allocation6]
    $region13: #{tpu_custom_call.1} parent=1 // pred_fallthru
      _
    // Predicated region
    $region14: #{tpu_custom_call.1} parent=1 // pred_check
      _
    $region15: #{tpu_custom_call.1} parent=1 // pred_check_branch
      %51 = sbr.rel (0) target = $region17
    $region16: #{tpu_custom_call.1} parent=1 // pred_region
      %53 = vsyncadd [#allocation6], 0
      %s55 = sshll.u32 %s3, 4
      %s56 = int_to_ptr.hbm [resolvable:$true] %s55
      %s57 = sshll.u32 [#allocation7], 4
      %s58 = int_to_ptr.vmem [resolvable:$true] %s57
      %60 = dma.hbm_to_vmem [thread:$0]  %s56, 32, %s58, [#allocation6]
    $region17: #{tpu_custom_call.1} parent=1 // pred_fallthru
      _
    // Predicated region
    $region18: #{tpu_custom_call.1} parent=1 // pred_check
      _
    $region19: #{tpu_custom_call.1} parent=1 // pred_check_branch
      %62 = sbr.rel (0) target = $region21
    $region20: #{tpu_custom_call.1} parent=1 // pred_region
      %64 = vsyncadd [#allocation9], 0
      %s66 = sshll.u32 %s4, 4
      %s67 = int_to_ptr.hbm [resolvable:$true] %s66
      %s68 = sshll.u32 [#allocation8], 4
      %s69 = int_to_ptr.vmem [resolvable:$true] %s68
      %71 = dma.hbm_to_vmem [thread:$0]  %s67, 128, %s69, [#allocation9]
    $region21: #{tpu_custom_call.1} parent=1 // pred_fallthru
      _
    // Predicated region
    $region22: #{tpu_custom_call.1} parent=1 // pred_check
      _
    $region23: #{tpu_custom_call.1} parent=1 // pred_check_branch
      %73 = sbr.rel (0) target = $region25
    $region24: #{tpu_custom_call.1} parent=1 // pred_region
      %75 = vsyncadd [#allocation9], 0
      %s77 = sshll.u32 %s5, 4
      %s78 = int_to_ptr.hbm [resolvable:$true] %s77
      %s79 = sshll.u32 [#allocation10], 4
      %s80 = int_to_ptr.vmem [resolvable:$true] %s79
      %82 = dma.hbm_to_vmem [thread:$0]  %s78, 128, %s80, [#allocation9]
    $region25: #{tpu_custom_call.1} parent=1 // pred_fallthru
      _
    // Predicated region
    $region26: #{tpu_custom_call.1} parent=1 // pred_check
      _
    $region27: #{tpu_custom_call.1} parent=1 // pred_check_branch
      %84 = sbr.rel (0) target = $region29
    $region28: #{tpu_custom_call.1} parent=1 // pred_region
      _
    $region29: #{tpu_custom_call.1} parent=1 // pred_fallthru
      _
    // Predicated region
    $region30: #{tpu_custom_call.1} parent=1 // pred_check
      _
    $region31: #{tpu_custom_call.1} parent=1 // pred_check_branch
      %86 = sbr.rel (0) target = $region33
    $region32: #{tpu_custom_call.1} parent=1 // pred_region
      _
    $region33: #{tpu_custom_call.1} parent=1 // pred_fallthru
      _
    // Predicated region
    $region34: #{tpu_custom_call.1} parent=1 // pred_check
      _
    $region35: #{tpu_custom_call.1} parent=1 // pred_check_branch
      %88 = sbr.rel (0) target = $region37
    $region36: #{tpu_custom_call.1} parent=1 // pred_region
      %90 = vsyncadd [#allocation12], 0
      %s91 = sshll.u32 %s8, 4
      %s92 = int_to_ptr.hbm [resolvable:$true] %s91
      %s93 = sshll.u32 [#allocation11], 4
      %s94 = int_to_ptr.vmem [resolvable:$true] %s93
      %99 = dma.hbm_to_vmem [thread:$0]  %s92, 512, %s94, [#allocation12], 128, 128, 8
    $region37: #{tpu_custom_call.1} parent=1 // pred_fallthru
      _
    // Predicated region
    $region38: #{tpu_custom_call.1} parent=1 // pred_check
      _
    $region39: #{tpu_custom_call.1} parent=1 // pred_check_branch
      %101 = sbr.rel (0) target = $region41
    $region40: #{tpu_custom_call.1} parent=1 // pred_region
      %103 = vsyncadd [#allocation12], 0
      %s104 = sshll.u32 %s9, 4
      %s105 = int_to_ptr.hbm [resolvable:$true] %s104
      %s106 = sshll.u32 [#allocation13], 4
      %s107 = int_to_ptr.vmem [resolvable:$true] %s106
      %112 = dma.hbm_to_vmem [thread:$0]  %s105, 512, %s107, [#allocation12], 128, 128, 8
    $region41: #{tpu_custom_call.1} parent=1 // pred_fallthru
      _
    // Predicated region
    $region42: #{tpu_custom_call.1} parent=1 // pred_check
      _
    $region43: #{tpu_custom_call.1} parent=1 // pred_check_branch
      %114 = sbr.rel (0) target = $region45
    $region44: #{tpu_custom_call.1} parent=1 // pred_region
      %116 = vsyncadd [#allocation15], 0
      %s117 = sshll.u32 %s10, 4
      %s118 = int_to_ptr.hbm [resolvable:$true] %s117
      %s119 = sshll.u32 [#allocation14], 4
      %s120 = int_to_ptr.vmem [resolvable:$true] %s119
      %125 = dma.hbm_to_vmem [thread:$0]  %s118, 512, %s120, [#allocation15], 128, 128, 8
    $region45: #{tpu_custom_call.1} parent=1 // pred_fallthru
      _
    // Predicated region
    $region46: #{tpu_custom_call.1} parent=1 // pred_check
      _
    $region47: #{tpu_custom_call.1} parent=1 // pred_check_branch
      %127 = sbr.rel (0) target = $region49
    $region48: #{tpu_custom_call.1} parent=1 // pred_region
      %129 = vsyncadd [#allocation15], 0
      %s130 = sshll.u32 %s11, 4
      %s131 = int_to_ptr.hbm [resolvable:$true] %s130
      %s132 = sshll.u32 [#allocation16], 4
      %s133 = int_to_ptr.vmem [resolvable:$true] %s132
      %138 = dma.hbm_to_vmem [thread:$0]  %s131, 512, %s133, [#allocation15], 128, 128, 8
    $region49: #{tpu_custom_call.1} parent=1 // pred_fallthru
      _
    // Predicated region
    $region50: #{tpu_custom_call.1} parent=1 // pred_check
      _
    $region51: #{tpu_custom_call.1} parent=1 // pred_check_branch
      %140 = sbr.rel (0) target = $region53
    $region52: #{tpu_custom_call.1} parent=1 // pred_region
      _
    $region53: #{tpu_custom_call.1} parent=1 // pred_fallthru
      _
    // Predicated region
    $region54: #{tpu_custom_call.1} parent=1 // pred_check
      _
    $region55: #{tpu_custom_call.1} parent=1 // pred_check_branch
      %142 = sbr.rel (0) target = $region57
    $region56: #{tpu_custom_call.1} parent=1 // pred_region
      %144 = dma.done [#allocation3], 256
    $region57: #{tpu_custom_call.1} parent=1 // pred_fallthru
      _
    // Predicated region
    $region58: #{tpu_custom_call.1} parent=1 // pred_check
      _
    $region59: #{tpu_custom_call.1} parent=1 // pred_check_branch
      %146 = sbr.rel (0) target = $region61
    $region60: #{tpu_custom_call.1} parent=1 // pred_region
      %148 = dma.done [#allocation6], 128
    $region61: #{tpu_custom_call.1} parent=1 // pred_fallthru
      _
    // Predicated region
    $region62: #{tpu_custom_call.1} parent=1 // pred_check
      _
    $region63: #{tpu_custom_call.1} parent=1 // pred_check_branch
      %150 = sbr.rel (0) target = $region65
    $region64: #{tpu_custom_call.1} parent=1 // pred_region
      %152 = dma.done [#allocation6], 32
    $region65: #{tpu_custom_call.1} parent=1 // pred_fallthru
      _
    // Predicated region
    $region66: #{tpu_custom_call.1} parent=1 // pred_check
      _
    $region67: #{tpu_custom_call.1} parent=1 // pred_check_branch
      %154 = sbr.rel (0) target = $region69
    $region68: #{tpu_custom_call.1} parent=1 // pred_region
      %156 = dma.done [#allocation9], 128
    $region69: #{tpu_custom_call.1} parent=1 // pred_fallthru
      _
    // Predicated region
    $region70: #{tpu_custom_call.1} parent=1 // pred_check
      _
    $region71: #{tpu_custom_call.1} parent=1 // pred_check_branch
      %158 = sbr.rel (0) target = $region73
    $region72: #{tpu_custom_call.1} parent=1 // pred_region
      %160 = dma.done [#allocation9], 128
    $region73: #{tpu_custom_call.1} parent=1 // pred_fallthru
      _
    // Predicated region
    $region74: #{tpu_custom_call.1} parent=1 // pred_check
      _
    $region75: #{tpu_custom_call.1} parent=1 // pred_check_branch
      %162 = sbr.rel (0) target = $region77
    $region76: #{tpu_custom_call.1} parent=1 // pred_region
      %164 = dma.done [#allocation12], 512
    $region77: #{tpu_custom_call.1} parent=1 // pred_fallthru
      _
    // Predicated region
    $region78: #{tpu_custom_call.1} parent=1 // pred_check
      _
    $region79: #{tpu_custom_call.1} parent=1 // pred_check_branch
      %166 = sbr.rel (0) target = $region81
    $region80: #{tpu_custom_call.1} parent=1 // pred_region
      %168 = dma.done [#allocation12], 512
    $region81: #{tpu_custom_call.1} parent=1 // pred_fallthru
      _
    // Predicated region
    $region82: #{tpu_custom_call.1} parent=1 // pred_check
      _
    $region83: #{tpu_custom_call.1} parent=1 // pred_check_branch
      %170 = sbr.rel (0) target = $region85
    $region84: #{tpu_custom_call.1} parent=1 // pred_region
      %172 = dma.done [#allocation15], 512
    $region85: #{tpu_custom_call.1} parent=1 // pred_fallthru
      _
    // Predicated region
    $region86: #{tpu_custom_call.1} parent=1 // pred_check
      _
    $region87: #{tpu_custom_call.1} parent=1 // pred_check_branch
      %174 = sbr.rel (0) target = $region89
    $region88: #{tpu_custom_call.1} parent=1 // pred_region
      %176 = dma.done [#allocation15], 512
    $region89: #{tpu_custom_call.1} parent=1 // pred_fallthru
      _
    %v177 = vld [vmem:[#allocation2] sm:$0xff]
    %v178 = vld [vmem:[#allocation2 + $0x8] sm:$0xff]
    %v179 = vld [vmem:[%s1] sm:$0xff]
    %v180 = vld [vmem:[%s1 + $0x8] sm:$0xff]
    %v181 = vld [vmem:[%s1 + $0x10] sm:$0xff]
    %v182 = vld [vmem:[%s1 + $0x18] sm:$0xff]
    %v183 = vld [vmem:[#allocation5] sm:$0xff]
    %v184 = vld [vmem:[#allocation7] sm:$0x3]
    %v185 = vld [vmem:[#allocation8] sm:$0x3f]
    %vm186 = vcmask 261120
    %v187 = vsel %vm186, %v177, 0.0
    %188 = vadd.xlane.f32.xlu0 %v187
    %v189 = vpop.xlane.xlu0 %188
    %v190 = vsel %vm186, %v178, 0.0
    %191 = vadd.xlane.f32.xlu0 %v190
    %v192 = vpop.xlane.xlu0 %191
    %v193 = vrcp.pop 32.0
    %v194 = vmul.f32 32.0, %v193
    %v195 = vsub.f32 1.0, %v194
    %v196 = vmul.f32 %v193, %v195
    %v197 = vadd.f32 %v193, %v196
    %vm198 = vweird.f32 %v193
    %v199 = vsel %vm198, %v193, %v197
    %v200 = vmul.f32 %v189, %v199
    %v201 = vmul.f32 %v192, %v199
    %v202 = vsub.f32 %v177, %v200
    %v203 = vsub.f32 %v178, %v201
    %v204 = vmul.f32 %v202, %v202
    %v205 = vmul.f32 %v203, %v203
    %v206 = vsel %vm186, %v204, 0.0
    %207 = vadd.xlane.f32.xlu0 %v206
    %v208 = vpop.xlane.xlu0 %207
    %v209 = vsel %vm186, %v205, 0.0
    %210 = vadd.xlane.f32.xlu0 %v209
    %v211 = vpop.xlane.xlu0 %210
    %v212 = vmul.f32 %v208, %v199
    %v213 = vmul.f32 %v211, %v199
    %v214 = vadd.f32 %v212, 1e-06
    %v215 = vadd.f32 %v213, 1e-06
    %v216 = vrsqrt.pop %v214
    %v217 = vmul.f32 %v216, %v214
    %v218 = vmul.f32 %v217, %v216
    %v219 = vmul.f32 0.5, %v218
    %v220 = vsub.f32 1.5, %v219
    %v221 = vmul.f32 %v216, %v220
    %vm222 = vweird.f32 %v214
    %vm223 = vweird.f32 %v216
    %vm224 = vmor %vm222, %vm223
    %v225 = vsel %vm224, %v216, %v221
    %v226 = vrsqrt.pop %v215
    %v227 = vmul.f32 %v226, %v215
    %v228 = vmul.f32 %v227, %v226
    %v229 = vmul.f32 0.5, %v228
    %v230 = vsub.f32 1.5, %v229
    %v231 = vmul.f32 %v226, %v230
    %vm232 = vweird.f32 %v215
    %vm233 = vweird.f32 %v226
    %vm234 = vmor %vm232, %vm233
    %v235 = vsel %vm234, %v226, %v231
    %v236 = vmul.f32 %v202, %v225
    %v237 = vmul.f32 %v203, %v235
    %v238 = vperm.slane %v185, 0
    %v239 = vmul.f32 %v236, %v238
    %v240 = vmul.f32 %v237, %v238
    %v241 = vperm.slane %v185, 1
    %v242 = vadd.f32 %v239, %v241
    %v243 = vadd.f32 %v240, %v241
    %v244 = vld [vmem:[%s6] sm:$0xff]
    %v245 = vld [vmem:[%s6 + $0x8] sm:$0xff]
    %v246 = vld [vmem:[%s6 + $0x10] sm:$0xff]
    %v247 = vld [vmem:[%s6 + $0x18] sm:$0xff]
    %v248 = vld [vmem:[#allocation10] sm:$0x1]
    %v249 = vperm.slane %v248, 0
    %v251 = vsel %vm186, %v242, 0
    %v254 = vsel %vm186, %v243, 0
    %256 = vmatpush.msra.mxu0 0.0
    %257 = vmatpush.msra.mxu0 0.0
    %258 = vmatpush.msra.mxu0 0.0
    %259 = vmatpush.msra.mxu0 0.0
    %260 = vmatpush.msra.mxu0 0.0
    %261 = vmatpush.msra.mxu0 0.0
    %262 = vmatpush.msra.mxu0 0.0
    %263 = vmatpush.msra.mxu0 0.0
    %264 = vmatpush.msra.mxu0 0.0
    %265 = vmatpush.msra.mxu0 0.0
    %266 = vmatpush.msra.mxu0 0.0
    %267 = vmatpush.msra.mxu0 0.0
    %268 = vmatpush.msra.mxu0 %v247
    %269 = vmatpush.msra.mxu0 %v246
    %270 = vmatpush.msra.mxu0 %v245
    %271 = vmatpush.msra.mxu0 %v244
    %272 = vmatmul.f32.gmra.mxu0 %v251
    %v273 = vpop.f32.mrf.mxu0
    %v274 = vadd.f32 %v249, %v273
    %275 = vmatmul.f32.gmra.mxu0 %v254
    %v276 = vpop.f32.mrf.mxu0
    %v277 = vadd.f32 %v249, %v276
    %278 = vdwg.mxu0
    %280 = vrot.lane.b32.xlu0 %v274, 96
    %v281 = vpop.permute.xlu0 %280
    %vm282 = vcmask 64512
    %v283 = vsel %vm282, %v274, 0
    %v285 = vsel %vm282, %v281, 0
    %287 = vmatpush.xpose.msra.mxu0 0.0
    %288 = vmatpush.xpose.msra.mxu0 0.0
    %289 = vmatpush.xpose.msra.mxu0 0.0
    %290 = vmatpush.xpose.msra.mxu0 0.0
    %291 = vmatpush.xpose.msra.mxu0 0.0
    %292 = vmatpush.xpose.msra.mxu0 0.0
    %293 = vmatpush.xpose.msra.mxu0 0.0
    %294 = vmatpush.xpose.msra.mxu0 0.0
    %295 = vmatpush.xpose.msra.mxu0 0.0
    %296 = vmatpush.xpose.msra.mxu0 0.0
    %297 = vmatpush.xpose.msra.mxu0 0.0
    %298 = vmatpush.xpose.msra.mxu0 0.0
    %299 = vmatpush.xpose.msra.mxu0 0.0
    %300 = vmatpush.xpose.msra.mxu0 0.0
    %301 = vmatpush.xpose.msra.mxu0 0.0
    %302 = vmatpush.xpose.msra.mxu0 %v285
    %303 = vmatmul.f32.gmra.mxu0 %v283
    %v304 = vpop.f32.mrf.mxu0
    %v305 = vadd.f32 %v183, %v304
    %306 = vdwg.mxu0
    %v307 = vsel %vm282, %v305, -inf
    %308 = vmax.xlane.f32.xlu0 %v307
    %v309 = vpop.xlane.xlu0 %308
    %v310 = vsub.f32 %v305, %v309
    %v311 = vmul.f32 %v310, 1.442695
    %v312 = vpow.pop %v311
    %v313 = vsel %vm282, %v312, 0.0
    %314 = vadd.xlane.f32.xlu0 %v313
    %v315 = vpop.xlane.xlu0 %314
    %v316 = vrcp.pop %v315
    %v317 = vmul.f32 %v312, %v316
    %318 = vrot.lane.b32.xlu0 %v274, 64
    %v319 = vpop.permute.xlu0 %318
    %v322 = vsel %vm282, %v317, 0
    %324 = vmatpush.msra.mxu0 0.0
    %325 = vmatpush.msra.mxu0 0.0
    %326 = vmatpush.msra.mxu0 0.0
    %327 = vmatpush.msra.mxu0 0.0
    %328 = vmatpush.msra.mxu0 0.0
    %329 = vmatpush.msra.mxu0 0.0
    %330 = vmatpush.msra.mxu0 0.0
    %331 = vmatpush.msra.mxu0 0.0
    %332 = vmatpush.msra.mxu0 0.0
    %333 = vmatpush.msra.mxu0 0.0
    %334 = vmatpush.msra.mxu0 0.0
    %335 = vmatpush.msra.mxu0 0.0
    %336 = vmatpush.msra.mxu0 0.0
    %337 = vmatpush.msra.mxu0 0.0
    %338 = vmatpush.msra.mxu0 0.0
    %339 = vmatpush.msra.mxu0 %v319
    %340 = vmatmul.f32.gmra.mxu0 %v322
    %v341 = vpop.f32.mrf.mxu0
    %v342 = vadd.f32 0.0, %v341
    %343 = vdwg.mxu0
    %344 = vrot.lane.b32.xlu0 %v274, 120
    %v345 = vpop.permute.xlu0 %344
    %346 = vrot.lane.b32.xlu0 %v274, 88
    %v347 = vpop.permute.xlu0 %346
    %v348 = vsel %vm282, %v345, 0
    %v350 = vsel %vm282, %v347, 0
    %352 = vmatpush.xpose.msra.mxu0 0.0
    %353 = vmatpush.xpose.msra.mxu0 0.0
    %354 = vmatpush.xpose.msra.mxu0 0.0
    %355 = vmatpush.xpose.msra.mxu0 0.0
    %356 = vmatpush.xpose.msra.mxu0 0.0
    %357 = vmatpush.xpose.msra.mxu0 0.0
    %358 = vmatpush.xpose.msra.mxu0 0.0
    %359 = vmatpush.xpose.msra.mxu0 0.0
    %360 = vmatpush.xpose.msra.mxu0 0.0
    %361 = vmatpush.xpose.msra.mxu0 0.0
    %362 = vmatpush.xpose.msra.mxu0 0.0
    %363 = vmatpush.xpose.msra.mxu0 0.0
    %364 = vmatpush.xpose.msra.mxu0 0.0
    %365 = vmatpush.xpose.msra.mxu0 0.0
    %366 = vmatpush.xpose.msra.mxu0 0.0
    %367 = vmatpush.xpose.msra.mxu0 %v350
    %368 = vmatmul.f32.gmra.mxu0 %v348
    %v369 = vpop.f32.mrf.mxu0
    %v370 = vadd.f32 %v183, %v369
    %371 = vdwg.mxu0
    %v372 = vsel %vm282, %v370, -inf
    %373 = vmax.xlane.f32.xlu0 %v372
    %v374 = vpop.xlane.xlu0 %373
    %v375 = vsub.f32 %v370, %v374
    %v376 = vmul.f32 %v375, 1.442695
    %v377 = vpow.pop %v376
    %v378 = vsel %vm282, %v377, 0.0
    %379 = vadd.xlane.f32.xlu0 %v378
    %v380 = vpop.xlane.xlu0 %379
    %v381 = vrcp.pop %v380
    %v382 = vmul.f32 %v377, %v381
    %383 = vrot.lane.b32.xlu0 %v274, 56
    %v384 = vpop.permute.xlu0 %383
    %v387 = vsel %vm282, %v382, 0
    %389 = vmatpush.msra.mxu0 0.0
    %390 = vmatpush.msra.mxu0 0.0
    %391 = vmatpush.msra.mxu0 0.0
    %392 = vmatpush.msra.mxu0 0.0
    %393 = vmatpush.msra.mxu0 0.0
    %394 = vmatpush.msra.mxu0 0.0
    %395 = vmatpush.msra.mxu0 0.0
    %396 = vmatpush.msra.mxu0 0.0
    %397 = vmatpush.msra.mxu0 0.0
    %398 = vmatpush.msra.mxu0 0.0
    %399 = vmatpush.msra.mxu0 0.0
    %400 = vmatpush.msra.mxu0 0.0
    %401 = vmatpush.msra.mxu0 0.0
    %402 = vmatpush.msra.mxu0 0.0
    %403 = vmatpush.msra.mxu0 0.0
    %404 = vmatpush.msra.mxu0 %v384
    %405 = vmatmul.f32.gmra.mxu0 %v387
    %v406 = vpop.f32.mrf.mxu0
    %v407 = vadd.f32 0.0, %v406
    %408 = vdwg.mxu0
    %409 = vrot.lane.b32.xlu0 %v274, 112
    %v410 = vpop.permute.xlu0 %409
    %411 = vrot.lane.b32.xlu0 %v274, 80
    %v412 = vpop.permute.xlu0 %411
    %v413 = vsel %vm282, %v410, 0
    %v415 = vsel %vm282, %v412, 0
    %417 = vmatpush.xpose.msra.mxu0 0.0
    %418 = vmatpush.xpose.msra.mxu0 0.0
    %419 = vmatpush.xpose.msra.mxu0 0.0
    %420 = vmatpush.xpose.msra.mxu0 0.0
    %421 = vmatpush.xpose.msra.mxu0 0.0
    %422 = vmatpush.xpose.msra.mxu0 0.0
    %423 = vmatpush.xpose.msra.mxu0 0.0
    %424 = vmatpush.xpose.msra.mxu0 0.0
    %425 = vmatpush.xpose.msra.mxu0 0.0
    %426 = vmatpush.xpose.msra.mxu0 0.0
    %427 = vmatpush.xpose.msra.mxu0 0.0
    %428 = vmatpush.xpose.msra.mxu0 0.0
    %429 = vmatpush.xpose.msra.mxu0 0.0
    %430 = vmatpush.xpose.msra.mxu0 0.0
    %431 = vmatpush.xpose.msra.mxu0 0.0
    %432 = vmatpush.xpose.msra.mxu0 %v415
    %433 = vmatmul.f32.gmra.mxu0 %v413
    %v434 = vpop.f32.mrf.mxu0
    %v435 = vadd.f32 %v183, %v434
    %436 = vdwg.mxu0
    %v437 = vsel %vm282, %v435, -inf
    %438 = vmax.xlane.f32.xlu0 %v437
    %v439 = vpop.xlane.xlu0 %438
    %v440 = vsub.f32 %v435, %v439
    %v441 = vmul.f32 %v440, 1.442695
    %v442 = vpow.pop %v441
    %v443 = vsel %vm282, %v442, 0.0
    %444 = vadd.xlane.f32.xlu0 %v443
    %v445 = vpop.xlane.xlu0 %444
    %v446 = vrcp.pop %v445
    %v447 = vmul.f32 %v442, %v446
    %448 = vrot.lane.b32.xlu0 %v274, 48
    %v449 = vpop.permute.xlu0 %448
    %v452 = vsel %vm282, %v447, 0
    %454 = vmatpush.msra.mxu0 0.0
    %455 = vmatpush.msra.mxu0 0.0
    %456 = vmatpush.msra.mxu0 0.0
    %457 = vmatpush.msra.mxu0 0.0
    %458 = vmatpush.msra.mxu0 0.0
    %459 = vmatpush.msra.mxu0 0.0
    %460 = vmatpush.msra.mxu0 0.0
    %461 = vmatpush.msra.mxu0 0.0
    %462 = vmatpush.msra.mxu0 0.0
    %463 = vmatpush.msra.mxu0 0.0
    %464 = vmatpush.msra.mxu0 0.0
    %465 = vmatpush.msra.mxu0 0.0
    %466 = vmatpush.msra.mxu0 0.0
    %467 = vmatpush.msra.mxu0 0.0
    %468 = vmatpush.msra.mxu0 0.0
    %469 = vmatpush.msra.mxu0 %v449
    %470 = vmatmul.f32.gmra.mxu0 %v452
    %v471 = vpop.f32.mrf.mxu0
    %v472 = vadd.f32 0.0, %v471
    %473 = vdwg.mxu0
    %474 = vrot.lane.b32.xlu0 %v274, 104
    %v475 = vpop.permute.xlu0 %474
    %476 = vrot.lane.b32.xlu0 %v274, 72
    %v477 = vpop.permute.xlu0 %476
    %v478 = vsel %vm282, %v475, 0
    %v480 = vsel %vm282, %v477, 0
    %482 = vmatpush.xpose.msra.mxu0 0.0
    %483 = vmatpush.xpose.msra.mxu0 0.0
    %484 = vmatpush.xpose.msra.mxu0 0.0
    %485 = vmatpush.xpose.msra.mxu0 0.0
    %486 = vmatpush.xpose.msra.mxu0 0.0
    %487 = vmatpush.xpose.msra.mxu0 0.0
    %488 = vmatpush.xpose.msra.mxu0 0.0
    %489 = vmatpush.xpose.msra.mxu0 0.0
    %490 = vmatpush.xpose.msra.mxu0 0.0
    %491 = vmatpush.xpose.msra.mxu0 0.0
    %492 = vmatpush.xpose.msra.mxu0 0.0
    %493 = vmatpush.xpose.msra.mxu0 0.0
    %494 = vmatpush.xpose.msra.mxu0 0.0
    %495 = vmatpush.xpose.msra.mxu0 0.0
    %496 = vmatpush.xpose.msra.mxu0 0.0
    %497 = vmatpush.xpose.msra.mxu0 %v480
    %498 = vmatmul.f32.gmra.mxu0 %v478
    %v499 = vpop.f32.mrf.mxu0
    %v500 = vadd.f32 %v183, %v499
    %501 = vdwg.mxu0
    %v502 = vsel %vm282, %v500, -inf
    %503 = vmax.xlane.f32.xlu0 %v502
    %v504 = vpop.xlane.xlu0 %503
    %v505 = vsub.f32 %v500, %v504
    %v506 = vmul.f32 %v505, 1.442695
    %v507 = vpow.pop %v506
    %v508 = vsel %vm282, %v507, 0.0
    %509 = vadd.xlane.f32.xlu0 %v508
    %v510 = vpop.xlane.xlu0 %509
    %v511 = vrcp.pop %v510
    %v512 = vmul.f32 %v507, %v511
    %513 = vrot.lane.b32.xlu0 %v274, 40
    %v514 = vpop.permute.xlu0 %513
    %v517 = vsel %vm282, %v512, 0
    %519 = vmatpush.msra.mxu0 0.0
    %520 = vmatpush.msra.mxu0 0.0
    %521 = vmatpush.msra.mxu0 0.0
    %522 = vmatpush.msra.mxu0 0.0
    %523 = vmatpush.msra.mxu0 0.0
    %524 = vmatpush.msra.mxu0 0.0
    %525 = vmatpush.msra.mxu0 0.0
    %526 = vmatpush.msra.mxu0 0.0
    %527 = vmatpush.msra.mxu0 0.0
    %528 = vmatpush.msra.mxu0 0.0
    %529 = vmatpush.msra.mxu0 0.0
    %530 = vmatpush.msra.mxu0 0.0
    %531 = vmatpush.msra.mxu0 0.0
    %532 = vmatpush.msra.mxu0 0.0
    %533 = vmatpush.msra.mxu0 0.0
    %534 = vmatpush.msra.mxu0 %v514
    %535 = vmatmul.f32.gmra.mxu0 %v517
    %v536 = vpop.f32.mrf.mxu0
    %v537 = vadd.f32 0.0, %v536
    %538 = vdwg.mxu0
    %540 = vrot.lane.b32.xlu0 %v407, 8
    %v541 = vpop.permute.xlu0 %540
    %544 = vrot.lane.b32.xlu0 %v472, 16
    %v545 = vpop.permute.xlu0 %544
    %548 = vrot.lane.b32.xlu0 %v537, 24
    %v549 = vpop.permute.xlu0 %548
    %v551 = vsel %vm282, %v342, %v541
    %vm552 = vcmask 130048
    %v553 = vsel %vm552, %v551, %v545
    %vm554 = vcmask 195584
    %v555 = vsel %vm554, %v553, %v549
    %557 = vrot.lane.b32.xlu0 %v277, 96
    %v558 = vpop.permute.xlu0 %557
    %v559 = vsel %vm282, %v277, 0
    %v561 = vsel %vm282, %v558, 0
    %563 = vmatpush.xpose.msra.mxu0 0.0
    %564 = vmatpush.xpose.msra.mxu0 0.0
    %565 = vmatpush.xpose.msra.mxu0 0.0
    %566 = vmatpush.xpose.msra.mxu0 0.0
    %567 = vmatpush.xpose.msra.mxu0 0.0
    %568 = vmatpush.xpose.msra.mxu0 0.0
    %569 = vmatpush.xpose.msra.mxu0 0.0
    %570 = vmatpush.xpose.msra.mxu0 0.0
    %571 = vmatpush.xpose.msra.mxu0 0.0
    %572 = vmatpush.xpose.msra.mxu0 0.0
    %573 = vmatpush.xpose.msra.mxu0 0.0
    %574 = vmatpush.xpose.msra.mxu0 0.0
    %575 = vmatpush.xpose.msra.mxu0 0.0
    %576 = vmatpush.xpose.msra.mxu0 0.0
    %577 = vmatpush.xpose.msra.mxu0 0.0
    %578 = vmatpush.xpose.msra.mxu0 %v561
    %579 = vmatmul.f32.gmra.mxu0 %v559
    %v580 = vpop.f32.mrf.mxu0
    %v581 = vadd.f32 %v183, %v580
    %582 = vdwg.mxu0
    %v583 = vsel %vm282, %v581, -inf
    %584 = vmax.xlane.f32.xlu0 %v583
    %v585 = vpop.xlane.xlu0 %584
    %v586 = vsub.f32 %v581, %v585
    %v587 = vmul.f32 %v586, 1.442695
    %v588 = vpow.pop %v587
    %v589 = vsel %vm282, %v588, 0.0
    %590 = vadd.xlane.f32.xlu0 %v589
    %v591 = vpop.xlane.xlu0 %590
    %v592 = vrcp.pop %v591
    %v593 = vmul.f32 %v588, %v592
    %594 = vrot.lane.b32.xlu0 %v277, 64
    %v595 = vpop.permute.xlu0 %594
    %v598 = vsel %vm282, %v593, 0
    %600 = vmatpush.msra.mxu0 0.0
    %601 = vmatpush.msra.mxu0 0.0
    %602 = vmatpush.msra.mxu0 0.0
    %603 = vmatpush.msra.mxu0 0.0
    %604 = vmatpush.msra.mxu0 0.0
    %605 = vmatpush.msra.mxu0 0.0
    %606 = vmatpush.msra.mxu0 0.0
    %607 = vmatpush.msra.mxu0 0.0
    %608 = vmatpush.msra.mxu0 0.0
    %609 = vmatpush.msra.mxu0 0.0
    %610 = vmatpush.msra.mxu0 0.0
    %611 = vmatpush.msra.mxu0 0.0
    %612 = vmatpush.msra.mxu0 0.0
    %613 = vmatpush.msra.mxu0 0.0
    %614 = vmatpush.msra.mxu0 0.0
    %615 = vmatpush.msra.mxu0 %v595
    %616 = vmatmul.f32.gmra.mxu0 %v598
    %v617 = vpop.f32.mrf.mxu0
    %v618 = vadd.f32 0.0, %v617
    %619 = vdwg.mxu0
    %620 = vrot.lane.b32.xlu0 %v277, 120
    %v621 = vpop.permute.xlu0 %620
    %622 = vrot.lane.b32.xlu0 %v277, 88
    %v623 = vpop.permute.xlu0 %622
    %v624 = vsel %vm282, %v621, 0
    %v626 = vsel %vm282, %v623, 0
    %628 = vmatpush.xpose.msra.mxu0 0.0
    %629 = vmatpush.xpose.msra.mxu0 0.0
    %630 = vmatpush.xpose.msra.mxu0 0.0
    %631 = vmatpush.xpose.msra.mxu0 0.0
    %632 = vmatpush.xpose.msra.mxu0 0.0
    %633 = vmatpush.xpose.msra.mxu0 0.0
    %634 = vmatpush.xpose.msra.mxu0 0.0
    %635 = vmatpush.xpose.msra.mxu0 0.0
    %636 = vmatpush.xpose.msra.mxu0 0.0
    %637 = vmatpush.xpose.msra.mxu0 0.0
    %638 = vmatpush.xpose.msra.mxu0 0.0
    %639 = vmatpush.xpose.msra.mxu0 0.0
    %640 = vmatpush.xpose.msra.mxu0 0.0
    %641 = vmatpush.xpose.msra.mxu0 0.0
    %642 = vmatpush.xpose.msra.mxu0 0.0
    %643 = vmatpush.xpose.msra.mxu0 %v626
    %644 = vmatmul.f32.gmra.mxu0 %v624
    %v645 = vpop.f32.mrf.mxu0
    %v646 = vadd.f32 %v183, %v645
    %647 = vdwg.mxu0
    %v648 = vsel %vm282, %v646, -inf
    %649 = vmax.xlane.f32.xlu0 %v648
    %v650 = vpop.xlane.xlu0 %649
    %v651 = vsub.f32 %v646, %v650
    %v652 = vmul.f32 %v651, 1.442695
    %v653 = vpow.pop %v652
    %v654 = vsel %vm282, %v653, 0.0
    %655 = vadd.xlane.f32.xlu0 %v654
    %v656 = vpop.xlane.xlu0 %655
    %v657 = vrcp.pop %v656
    %v658 = vmul.f32 %v653, %v657
    %659 = vrot.lane.b32.xlu0 %v277, 56
    %v660 = vpop.permute.xlu0 %659
    %v663 = vsel %vm282, %v658, 0
    %665 = vmatpush.msra.mxu0 0.0
    %666 = vmatpush.msra.mxu0 0.0
    %667 = vmatpush.msra.mxu0 0.0
    %668 = vmatpush.msra.mxu0 0.0
    %669 = vmatpush.msra.mxu0 0.0
    %670 = vmatpush.msra.mxu0 0.0
    %671 = vmatpush.msra.mxu0 0.0
    %672 = vmatpush.msra.mxu0 0.0
    %673 = vmatpush.msra.mxu0 0.0
    %674 = vmatpush.msra.mxu0 0.0
    %675 = vmatpush.msra.mxu0 0.0
    %676 = vmatpush.msra.mxu0 0.0
    %677 = vmatpush.msra.mxu0 0.0
    %678 = vmatpush.msra.mxu0 0.0
    %679 = vmatpush.msra.mxu0 0.0
    %680 = vmatpush.msra.mxu0 %v660
    %681 = vmatmul.f32.gmra.mxu0 %v663
    %v682 = vpop.f32.mrf.mxu0
    %v683 = vadd.f32 0.0, %v682
    %684 = vdwg.mxu0
    %685 = vrot.lane.b32.xlu0 %v277, 112
    %v686 = vpop.permute.xlu0 %685
    %687 = vrot.lane.b32.xlu0 %v277, 80
    %v688 = vpop.permute.xlu0 %687
    %v689 = vsel %vm282, %v686, 0
    %v691 = vsel %vm282, %v688, 0
    %693 = vmatpush.xpose.msra.mxu0 0.0
    %694 = vmatpush.xpose.msra.mxu0 0.0
    %695 = vmatpush.xpose.msra.mxu0 0.0
    %696 = vmatpush.xpose.msra.mxu0 0.0
    %697 = vmatpush.xpose.msra.mxu0 0.0
    %698 = vmatpush.xpose.msra.mxu0 0.0
    %699 = vmatpush.xpose.msra.mxu0 0.0
    %700 = vmatpush.xpose.msra.mxu0 0.0
    %701 = vmatpush.xpose.msra.mxu0 0.0
    %702 = vmatpush.xpose.msra.mxu0 0.0
    %703 = vmatpush.xpose.msra.mxu0 0.0
    %704 = vmatpush.xpose.msra.mxu0 0.0
    %705 = vmatpush.xpose.msra.mxu0 0.0
    %706 = vmatpush.xpose.msra.mxu0 0.0
    %707 = vmatpush.xpose.msra.mxu0 0.0
    %708 = vmatpush.xpose.msra.mxu0 %v691
    %709 = vmatmul.f32.gmra.mxu0 %v689
    %v710 = vpop.f32.mrf.mxu0
    %v711 = vadd.f32 %v183, %v710
    %712 = vdwg.mxu0
    %v713 = vsel %vm282, %v711, -inf
    %714 = vmax.xlane.f32.xlu0 %v713
    %v715 = vpop.xlane.xlu0 %714
    %v716 = vsub.f32 %v711, %v715
    %v717 = vmul.f32 %v716, 1.442695
    %v718 = vpow.pop %v717
    %v719 = vsel %vm282, %v718, 0.0
    %720 = vadd.xlane.f32.xlu0 %v719
    %v721 = vpop.xlane.xlu0 %720
    %v722 = vrcp.pop %v721
    %v723 = vmul.f32 %v718, %v722
    %724 = vrot.lane.b32.xlu0 %v277, 48
    %v725 = vpop.permute.xlu0 %724
    %v728 = vsel %vm282, %v723, 0
    %730 = vmatpush.msra.mxu0 0.0
    %731 = vmatpush.msra.mxu0 0.0
    %732 = vmatpush.msra.mxu0 0.0
    %733 = vmatpush.msra.mxu0 0.0
    %734 = vmatpush.msra.mxu0 0.0
    %735 = vmatpush.msra.mxu0 0.0
    %736 = vmatpush.msra.mxu0 0.0
    %737 = vmatpush.msra.mxu0 0.0
    %738 = vmatpush.msra.mxu0 0.0
    %739 = vmatpush.msra.mxu0 0.0
    %740 = vmatpush.msra.mxu0 0.0
    %741 = vmatpush.msra.mxu0 0.0
    %742 = vmatpush.msra.mxu0 0.0
    %743 = vmatpush.msra.mxu0 0.0
    %744 = vmatpush.msra.mxu0 0.0
    %745 = vmatpush.msra.mxu0 %v725
    %746 = vmatmul.f32.gmra.mxu0 %v728
    %v747 = vpop.f32.mrf.mxu0
    %v748 = vadd.f32 0.0, %v747
    %749 = vdwg.mxu0
    %750 = vrot.lane.b32.xlu0 %v277, 104
    %v751 = vpop.permute.xlu0 %750
    %752 = vrot.lane.b32.xlu0 %v277, 72
    %v753 = vpop.permute.xlu0 %752
    %v754 = vsel %vm282, %v751, 0
    %v756 = vsel %vm282, %v753, 0
    %758 = vmatpush.xpose.msra.mxu0 0.0
    %759 = vmatpush.xpose.msra.mxu0 0.0
    %760 = vmatpush.xpose.msra.mxu0 0.0
    %761 = vmatpush.xpose.msra.mxu0 0.0
    %762 = vmatpush.xpose.msra.mxu0 0.0
    %763 = vmatpush.xpose.msra.mxu0 0.0
    %764 = vmatpush.xpose.msra.mxu0 0.0
    %765 = vmatpush.xpose.msra.mxu0 0.0
    %766 = vmatpush.xpose.msra.mxu0 0.0
    %767 = vmatpush.xpose.msra.mxu0 0.0
    %768 = vmatpush.xpose.msra.mxu0 0.0
    %769 = vmatpush.xpose.msra.mxu0 0.0
    %770 = vmatpush.xpose.msra.mxu0 0.0
    %771 = vmatpush.xpose.msra.mxu0 0.0
    %772 = vmatpush.xpose.msra.mxu0 0.0
    %773 = vmatpush.xpose.msra.mxu0 %v756
    %774 = vmatmul.f32.gmra.mxu0 %v754
    %v775 = vpop.f32.mrf.mxu0
    %v776 = vadd.f32 %v183, %v775
    %777 = vdwg.mxu0
    %v778 = vsel %vm282, %v776, -inf
    %779 = vmax.xlane.f32.xlu0 %v778
    %v780 = vpop.xlane.xlu0 %779
    %v781 = vsub.f32 %v776, %v780
    %v782 = vmul.f32 %v781, 1.442695
    %v783 = vpow.pop %v782
    %v784 = vsel %vm282, %v783, 0.0
    %785 = vadd.xlane.f32.xlu0 %v784
    %v786 = vpop.xlane.xlu0 %785
    %v787 = vrcp.pop %v786
    %v788 = vmul.f32 %v783, %v787
    %789 = vrot.lane.b32.xlu0 %v277, 40
    %v790 = vpop.permute.xlu0 %789
    %v793 = vsel %vm282, %v788, 0
    %795 = vmatpush.msra.mxu0 0.0
    %796 = vmatpush.msra.mxu0 0.0
    %797 = vmatpush.msra.mxu0 0.0
    %798 = vmatpush.msra.mxu0 0.0
    %799 = vmatpush.msra.mxu0 0.0
    %800 = vmatpush.msra.mxu0 0.0
    %801 = vmatpush.msra.mxu0 0.0
    %802 = vmatpush.msra.mxu0 0.0
    %803 = vmatpush.msra.mxu0 0.0
    %804 = vmatpush.msra.mxu0 0.0
    %805 = vmatpush.msra.mxu0 0.0
    %806 = vmatpush.msra.mxu0 0.0
    %807 = vmatpush.msra.mxu0 0.0
    %808 = vmatpush.msra.mxu0 0.0
    %809 = vmatpush.msra.mxu0 0.0
    %810 = vmatpush.msra.mxu0 %v790
    %811 = vmatmul.f32.gmra.mxu0 %v793
    %v812 = vpop.f32.mrf.mxu0
    %v813 = vadd.f32 0.0, %v812
    %814 = vdwg.mxu0
    %816 = vrot.lane.b32.xlu0 %v683, 8
    %v817 = vpop.permute.xlu0 %816
    %820 = vrot.lane.b32.xlu0 %v748, 16
    %v821 = vpop.permute.xlu0 %820
    %824 = vrot.lane.b32.xlu0 %v813, 24
    %v825 = vpop.permute.xlu0 %824
    %v827 = vsel %vm282, %v618, %v817
    %v828 = vsel %vm552, %v827, %v821
    %v829 = vsel %vm554, %v828, %v825
    %v830 = vld [vmem:[%s7] sm:$0xff]
    %v831 = vld [vmem:[%s7 + $0x8] sm:$0xff]
    %v832 = vld [vmem:[%s7 + $0x10] sm:$0xff]
    %v833 = vld [vmem:[%s7 + $0x18] sm:$0xff]
    %v835 = vsel %vm186, %v555, 0
    %v838 = vsel %vm186, %v829, 0
    %840 = vmatpush.msra.mxu0 0.0
    %841 = vmatpush.msra.mxu0 0.0
    %842 = vmatpush.msra.mxu0 0.0
    %843 = vmatpush.msra.mxu0 0.0
    %844 = vmatpush.msra.mxu0 0.0
    %845 = vmatpush.msra.mxu0 0.0
    %846 = vmatpush.msra.mxu0 0.0
    %847 = vmatpush.msra.mxu0 0.0
    %848 = vmatpush.msra.mxu0 0.0
    %849 = vmatpush.msra.mxu0 0.0
    %850 = vmatpush.msra.mxu0 0.0
    %851 = vmatpush.msra.mxu0 0.0
    %852 = vmatpush.msra.mxu0 %v833
    %853 = vmatpush.msra.mxu0 %v832
    %854 = vmatpush.msra.mxu0 %v831
    %855 = vmatpush.msra.mxu0 %v830
    %856 = vmatmul.f32.gmra.mxu0 %v835
    %v857 = vpop.f32.mrf.mxu0
    %v858 = vadd.f32 0.0, %v857
    %859 = vmatmul.f32.gmra.mxu0 %v838
    %v860 = vpop.f32.mrf.mxu0
    %v861 = vadd.f32 0.0, %v860
    %862 = vdwg.mxu0
    %v863 = vadd.f32 %v177, %v858
    %v864 = vadd.f32 %v178, %v861
    %v865 = vld [vmem:[#allocation10 + $0x1] sm:$0x1]
    %v866 = vperm.slane %v865, 0
    %v867 = vadd.f32 %v863, %v866
    %v868 = vadd.f32 %v864, %v866
    %v869 = vsel %vm186, %v867, 0.0
    %870 = vadd.xlane.f32.xlu0 %v869
    %v871 = vpop.xlane.xlu0 %870
    %v872 = vsel %vm186, %v868, 0.0
    %873 = vadd.xlane.f32.xlu0 %v872
    %v874 = vpop.xlane.xlu0 %873
    %v875 = vmul.f32 %v871, %v199
    %v876 = vmul.f32 %v874, %v199
    %v877 = vsub.f32 %v867, %v875
    %v878 = vsub.f32 %v868, %v876
    %v879 = vmul.f32 %v877, %v877
    %v880 = vmul.f32 %v878, %v878
    %v881 = vsel %vm186, %v879, 0.0
    %882 = vadd.xlane.f32.xlu0 %v881
    %v883 = vpop.xlane.xlu0 %882
    %v884 = vsel %vm186, %v880, 0.0
    %885 = vadd.xlane.f32.xlu0 %v884
    %v886 = vpop.xlane.xlu0 %885
    %v887 = vmul.f32 %v883, %v199
    %v888 = vmul.f32 %v886, %v199
    %v889 = vadd.f32 %v887, 1e-06
    %v890 = vadd.f32 %v888, 1e-06
    %v891 = vrsqrt.pop %v889
    %v892 = vmul.f32 %v891, %v889
    %v893 = vmul.f32 %v892, %v891
    %v894 = vmul.f32 0.5, %v893
    %v895 = vsub.f32 1.5, %v894
    %v896 = vmul.f32 %v891, %v895
    %vm897 = vweird.f32 %v889
    %vm898 = vweird.f32 %v891
    %vm899 = vmor %vm897, %vm898
    %v900 = vsel %vm899, %v891, %v896
    %v901 = vrsqrt.pop %v890
    %v902 = vmul.f32 %v901, %v890
    %v903 = vmul.f32 %v902, %v901
    %v904 = vmul.f32 0.5, %v903
    %v905 = vsub.f32 1.5, %v904
    %v906 = vmul.f32 %v901, %v905
    %vm907 = vweird.f32 %v890
    %vm908 = vweird.f32 %v901
    %vm909 = vmor %vm907, %vm908
    %v910 = vsel %vm909, %v901, %v906
    %v911 = vmul.f32 %v877, %v900
    %v912 = vmul.f32 %v878, %v910
    %v913 = vperm.slane %v185, 2
    %v914 = vmul.f32 %v911, %v913
    %v915 = vmul.f32 %v912, %v913
    %v916 = vperm.slane %v185, 3
    %v917 = vadd.f32 %v914, %v916
    %v918 = vadd.f32 %v915, %v916
    %v919 = vld [vmem:[#allocation11] sm:$0xff]
    %v920 = vld [vmem:[#allocation11 + $0x8] sm:$0xff]
    %v921 = vld [vmem:[#allocation11 + $0x10] sm:$0xff]
    %v922 = vld [vmem:[#allocation11 + $0x18] sm:$0xff]
    %v923 = vld [vmem:[#allocation10 + $0x2] sm:$0x1]
    %v924 = vperm.slane %v923, 0
    %v926 = vsel %vm186, %v917, 0
    %v929 = vsel %vm186, %v918, 0
    %931 = vmatpush.msra.mxu0 0.0
    %932 = vmatpush.msra.mxu0 0.0
    %933 = vmatpush.msra.mxu0 0.0
    %934 = vmatpush.msra.mxu0 0.0
    %935 = vmatpush.msra.mxu0 0.0
    %936 = vmatpush.msra.mxu0 0.0
    %937 = vmatpush.msra.mxu0 0.0
    %938 = vmatpush.msra.mxu0 0.0
    %939 = vmatpush.msra.mxu0 0.0
    %940 = vmatpush.msra.mxu0 0.0
    %941 = vmatpush.msra.mxu0 0.0
    %942 = vmatpush.msra.mxu0 0.0
    %943 = vmatpush.msra.mxu0 %v922
    %944 = vmatpush.msra.mxu0 %v921
    %945 = vmatpush.msra.mxu0 %v920
    %946 = vmatpush.msra.mxu0 %v919
    %947 = vmatmul.f32.gmra.mxu0 %v926
    %v948 = vpop.f32.mrf.mxu0
    %v949 = vadd.f32 %v924, %v948
    %950 = vmatmul.f32.gmra.mxu0 %v929
    %v951 = vpop.f32.mrf.mxu0
    %v952 = vadd.f32 %v924, %v951
    %953 = vdwg.mxu0
    %v954 = vld [vmem:[#allocation13] sm:$0xff]
    %v955 = vld [vmem:[#allocation13 + $0x8] sm:$0xff]
    %v956 = vld [vmem:[#allocation13 + $0x10] sm:$0xff]
    %v957 = vld [vmem:[#allocation13 + $0x18] sm:$0xff]
    %v958 = vld [vmem:[#allocation10 + $0x3] sm:$0x1]
    %v959 = vperm.slane %v958, 0
    %v961 = vsel %vm186, %v179, 0
    %v964 = vsel %vm186, %v180, 0
    %v967 = vsel %vm186, %v181, 0
    %v970 = vsel %vm186, %v182, 0
    %972 = vmatpush.msra.mxu0 0.0
    %973 = vmatpush.msra.mxu0 0.0
    %974 = vmatpush.msra.mxu0 0.0
    %975 = vmatpush.msra.mxu0 0.0
    %976 = vmatpush.msra.mxu0 0.0
    %977 = vmatpush.msra.mxu0 0.0
    %978 = vmatpush.msra.mxu0 0.0
    %979 = vmatpush.msra.mxu0 0.0
    %980 = vmatpush.msra.mxu0 0.0
    %981 = vmatpush.msra.mxu0 0.0
    %982 = vmatpush.msra.mxu0 0.0
    %983 = vmatpush.msra.mxu0 0.0
    %984 = vmatpush.msra.mxu0 %v957
    %985 = vmatpush.msra.mxu0 %v956
    %986 = vmatpush.msra.mxu0 %v955
    %987 = vmatpush.msra.mxu0 %v954
    %988 = vmatmul.f32.gmra.mxu0 %v961
    %v989 = vpop.f32.mrf.mxu0
    %v990 = vadd.f32 %v959, %v989
    %991 = vmatmul.f32.gmra.mxu0 %v964
    %v992 = vpop.f32.mrf.mxu0
    %v993 = vadd.f32 %v959, %v992
    %994 = vmatmul.f32.gmra.mxu0 %v967
    %v995 = vpop.f32.mrf.mxu0
    %v996 = vadd.f32 %v959, %v995
    %997 = vmatmul.f32.gmra.mxu0 %v970
    %v998 = vpop.f32.mrf.mxu0
    %v999 = vadd.f32 %v959, %v998
    %1000 = vdwg.mxu0
    %v1001 = vperm.slane %v184, 0
    %v1003 = vsel %vm282, %v949, 0
    %v1006 = vsel %vm282, %v990, 0
    %v1009 = vsel %vm282, %v993, 0
    %1011 = vmatpush.xpose.msra.mxu0 0.0
    %1012 = vmatpush.xpose.msra.mxu0 0.0
    %1013 = vmatpush.xpose.msra.mxu0 0.0
    %1014 = vmatpush.xpose.msra.mxu0 0.0
    %1015 = vmatpush.xpose.msra.mxu0 0.0
    %1016 = vmatpush.xpose.msra.mxu0 0.0
    %1017 = vmatpush.xpose.msra.mxu0 0.0
    %1018 = vmatpush.xpose.msra.mxu0 0.0
    %1019 = vmatpush.xpose.msra.mxu0 0.0
    %1020 = vmatpush.xpose.msra.mxu0 0.0
    %1021 = vmatpush.xpose.msra.mxu0 0.0
    %1022 = vmatpush.xpose.msra.mxu0 0.0
    %1023 = vmatpush.xpose.msra.mxu0 0.0
    %1024 = vmatpush.xpose.msra.mxu0 0.0
    %1025 = vmatpush.xpose.msra.mxu0 %v1009
    %1026 = vmatpush.xpose.msra.mxu0 %v1006
    %1027 = vmatmul.f32.gmra.mxu0 %v1003
    %v1028 = vpop.f32.mrf.mxu0
    %v1029 = vadd.f32 %v1001, %v1028
    %1030 = vdwg.mxu0
    %v1031 = vsel %vm552, %v1029, -inf
    %1032 = vmax.xlane.f32.xlu0 %v1031
    %v1033 = vpop.xlane.xlu0 %1032
    %v1034 = vsub.f32 %v1029, %v1033
    %v1035 = vmul.f32 %v1034, 1.442695
    %v1036 = vpow.pop %v1035
    %v1037 = vsel %vm552, %v1036, 0.0
    %1038 = vadd.xlane.f32.xlu0 %v1037
    %v1039 = vpop.xlane.xlu0 %1038
    %v1040 = vrcp.pop %v1039
    %v1041 = vmul.f32 %v1036, %v1040
    %1042 = vrot.lane.b32.xlu0 %v990, 96
    %v1043 = vpop.permute.xlu0 %1042
    %1044 = vrot.lane.b32.xlu0 %v993, 96
    %v1045 = vpop.permute.xlu0 %1044
    %v1049 = vsel %vm552, %v1041, 0
    %1051 = vmatpush.msra.mxu0 0.0
    %1052 = vmatpush.msra.mxu0 0.0
    %1053 = vmatpush.msra.mxu0 0.0
    %1054 = vmatpush.msra.mxu0 0.0
    %1055 = vmatpush.msra.mxu0 0.0
    %1056 = vmatpush.msra.mxu0 0.0
    %1057 = vmatpush.msra.mxu0 0.0
    %1058 = vmatpush.msra.mxu0 0.0
    %1059 = vmatpush.msra.mxu0 0.0
    %1060 = vmatpush.msra.mxu0 0.0
    %1061 = vmatpush.msra.mxu0 0.0
    %1062 = vmatpush.msra.mxu0 0.0
    %1063 = vmatpush.msra.mxu0 0.0
    %1064 = vmatpush.msra.mxu0 0.0
    %1065 = vmatpush.msra.mxu0 %v1045
    %1066 = vmatpush.msra.mxu0 %v1043
    %1067 = vmatmul.f32.gmra.mxu0 %v1049
    %v1068 = vpop.f32.mrf.mxu0
    %v1069 = vadd.f32 0.0, %v1068
    %1070 = vdwg.mxu0
    %1071 = vrot.lane.b32.xlu0 %v949, 120
    %v1072 = vpop.permute.xlu0 %1071
    %1073 = vrot.lane.b32.xlu0 %v990, 120
    %v1074 = vpop.permute.xlu0 %1073
    %1075 = vrot.lane.b32.xlu0 %v993, 120
    %v1076 = vpop.permute.xlu0 %1075
    %v1077 = vsel %vm282, %v1072, 0
    %v1079 = vsel %vm282, %v1074, 0
    %v1081 = vsel %vm282, %v1076, 0
    %1083 = vmatpush.xpose.msra.mxu0 0.0
    %1084 = vmatpush.xpose.msra.mxu0 0.0
    %1085 = vmatpush.xpose.msra.mxu0 0.0
    %1086 = vmatpush.xpose.msra.mxu0 0.0
    %1087 = vmatpush.xpose.msra.mxu0 0.0
    %1088 = vmatpush.xpose.msra.mxu0 0.0
    %1089 = vmatpush.xpose.msra.mxu0 0.0
    %1090 = vmatpush.xpose.msra.mxu0 0.0
    %1091 = vmatpush.xpose.msra.mxu0 0.0
    %1092 = vmatpush.xpose.msra.mxu0 0.0
    %1093 = vmatpush.xpose.msra.mxu0 0.0
    %1094 = vmatpush.xpose.msra.mxu0 0.0
    %1095 = vmatpush.xpose.msra.mxu0 0.0
    %1096 = vmatpush.xpose.msra.mxu0 0.0
    %1097 = vmatpush.xpose.msra.mxu0 %v1081
    %1098 = vmatpush.xpose.msra.mxu0 %v1079
    %1099 = vmatmul.f32.gmra.mxu0 %v1077
    %v1100 = vpop.f32.mrf.mxu0
    %v1101 = vadd.f32 %v1001, %v1100
    %1102 = vdwg.mxu0
    %v1103 = vsel %vm552, %v1101, -inf
    %1104 = vmax.xlane.f32.xlu0 %v1103
    %v1105 = vpop.xlane.xlu0 %1104
    %v1106 = vsub.f32 %v1101, %v1105
    %v1107 = vmul.f32 %v1106, 1.442695
    %v1108 = vpow.pop %v1107
    %v1109 = vsel %vm552, %v1108, 0.0
    %1110 = vadd.xlane.f32.xlu0 %v1109
    %v1111 = vpop.xlane.xlu0 %1110
    %v1112 = vrcp.pop %v1111
    %v1113 = vmul.f32 %v1108, %v1112
    %1114 = vrot.lane.b32.xlu0 %v990, 88
    %v1115 = vpop.permute.xlu0 %1114
    %1116 = vrot.lane.b32.xlu0 %v993, 88
    %v1117 = vpop.permute.xlu0 %1116
    %v1121 = vsel %vm552, %v1113, 0
    %1123 = vmatpush.msra.mxu0 0.0
    %1124 = vmatpush.msra.mxu0 0.0
    %1125 = vmatpush.msra.mxu0 0.0
    %1126 = vmatpush.msra.mxu0 0.0
    %1127 = vmatpush.msra.mxu0 0.0
    %1128 = vmatpush.msra.mxu0 0.0
    %1129 = vmatpush.msra.mxu0 0.0
    %1130 = vmatpush.msra.mxu0 0.0
    %1131 = vmatpush.msra.mxu0 0.0
    %1132 = vmatpush.msra.mxu0 0.0
    %1133 = vmatpush.msra.mxu0 0.0
    %1134 = vmatpush.msra.mxu0 0.0
    %1135 = vmatpush.msra.mxu0 0.0
    %1136 = vmatpush.msra.mxu0 0.0
    %1137 = vmatpush.msra.mxu0 %v1117
    %1138 = vmatpush.msra.mxu0 %v1115
    %1139 = vmatmul.f32.gmra.mxu0 %v1121
    %v1140 = vpop.f32.mrf.mxu0
    %v1141 = vadd.f32 0.0, %v1140
    %1142 = vdwg.mxu0
    %1143 = vrot.lane.b32.xlu0 %v949, 112
    %v1144 = vpop.permute.xlu0 %1143
    %1145 = vrot.lane.b32.xlu0 %v990, 112
    %v1146 = vpop.permute.xlu0 %1145
    %1147 = vrot.lane.b32.xlu0 %v993, 112
    %v1148 = vpop.permute.xlu0 %1147
    %v1149 = vsel %vm282, %v1144, 0
    %v1151 = vsel %vm282, %v1146, 0
    %v1153 = vsel %vm282, %v1148, 0
    %1155 = vmatpush.xpose.msra.mxu0 0.0
    %1156 = vmatpush.xpose.msra.mxu0 0.0
    %1157 = vmatpush.xpose.msra.mxu0 0.0
    %1158 = vmatpush.xpose.msra.mxu0 0.0
    %1159 = vmatpush.xpose.msra.mxu0 0.0
    %1160 = vmatpush.xpose.msra.mxu0 0.0
    %1161 = vmatpush.xpose.msra.mxu0 0.0
    %1162 = vmatpush.xpose.msra.mxu0 0.0
    %1163 = vmatpush.xpose.msra.mxu0 0.0
    %1164 = vmatpush.xpose.msra.mxu0 0.0
    %1165 = vmatpush.xpose.msra.mxu0 0.0
    %1166 = vmatpush.xpose.msra.mxu0 0.0
    %1167 = vmatpush.xpose.msra.mxu0 0.0
    %1168 = vmatpush.xpose.msra.mxu0 0.0
    %1169 = vmatpush.xpose.msra.mxu0 %v1153
    %1170 = vmatpush.xpose.msra.mxu0 %v1151
    %1171 = vmatmul.f32.gmra.mxu0 %v1149
    %v1172 = vpop.f32.mrf.mxu0
    %v1173 = vadd.f32 %v1001, %v1172
    %1174 = vdwg.mxu0
    %v1175 = vsel %vm552, %v1173, -inf
    %1176 = vmax.xlane.f32.xlu0 %v1175
    %v1177 = vpop.xlane.xlu0 %1176
    %v1178 = vsub.f32 %v1173, %v1177
    %v1179 = vmul.f32 %v1178, 1.442695
    %v1180 = vpow.pop %v1179
    %v1181 = vsel %vm552, %v1180, 0.0
    %1182 = vadd.xlane.f32.xlu0 %v1181
    %v1183 = vpop.xlane.xlu0 %1182
    %v1184 = vrcp.pop %v1183
    %v1185 = vmul.f32 %v1180, %v1184
    %1186 = vrot.lane.b32.xlu0 %v990, 80
    %v1187 = vpop.permute.xlu0 %1186
    %1188 = vrot.lane.b32.xlu0 %v993, 80
    %v1189 = vpop.permute.xlu0 %1188
    %v1193 = vsel %vm552, %v1185, 0
    %1195 = vmatpush.msra.mxu0 0.0
    %1196 = vmatpush.msra.mxu0 0.0
    %1197 = vmatpush.msra.mxu0 0.0
    %1198 = vmatpush.msra.mxu0 0.0
    %1199 = vmatpush.msra.mxu0 0.0
    %1200 = vmatpush.msra.mxu0 0.0
    %1201 = vmatpush.msra.mxu0 0.0
    %1202 = vmatpush.msra.mxu0 0.0
    %1203 = vmatpush.msra.mxu0 0.0
    %1204 = vmatpush.msra.mxu0 0.0
    %1205 = vmatpush.msra.mxu0 0.0
    %1206 = vmatpush.msra.mxu0 0.0
    %1207 = vmatpush.msra.mxu0 0.0
    %1208 = vmatpush.msra.mxu0 0.0
    %1209 = vmatpush.msra.mxu0 %v1189
    %1210 = vmatpush.msra.mxu0 %v1187
    %1211 = vmatmul.f32.gmra.mxu0 %v1193
    %v1212 = vpop.f32.mrf.mxu0
    %v1213 = vadd.f32 0.0, %v1212
    %1214 = vdwg.mxu0
    %1215 = vrot.lane.b32.xlu0 %v949, 104
    %v1216 = vpop.permute.xlu0 %1215
    %1217 = vrot.lane.b32.xlu0 %v990, 104
    %v1218 = vpop.permute.xlu0 %1217
    %1219 = vrot.lane.b32.xlu0 %v993, 104
    %v1220 = vpop.permute.xlu0 %1219
    %v1221 = vsel %vm282, %v1216, 0
    %v1223 = vsel %vm282, %v1218, 0
    %v1225 = vsel %vm282, %v1220, 0
    %1227 = vmatpush.xpose.msra.mxu0 0.0
    %1228 = vmatpush.xpose.msra.mxu0 0.0
    %1229 = vmatpush.xpose.msra.mxu0 0.0
    %1230 = vmatpush.xpose.msra.mxu0 0.0
    %1231 = vmatpush.xpose.msra.mxu0 0.0
    %1232 = vmatpush.xpose.msra.mxu0 0.0
    %1233 = vmatpush.xpose.msra.mxu0 0.0
    %1234 = vmatpush.xpose.msra.mxu0 0.0
    %1235 = vmatpush.xpose.msra.mxu0 0.0
    %1236 = vmatpush.xpose.msra.mxu0 0.0
    %1237 = vmatpush.xpose.msra.mxu0 0.0
    %1238 = vmatpush.xpose.msra.mxu0 0.0
    %1239 = vmatpush.xpose.msra.mxu0 0.0
    %1240 = vmatpush.xpose.msra.mxu0 0.0
    %1241 = vmatpush.xpose.msra.mxu0 %v1225
    %1242 = vmatpush.xpose.msra.mxu0 %v1223
    %1243 = vmatmul.f32.gmra.mxu0 %v1221
    %v1244 = vpop.f32.mrf.mxu0
    %v1245 = vadd.f32 %v1001, %v1244
    %1246 = vdwg.mxu0
    %v1247 = vsel %vm552, %v1245, -inf
    %1248 = vmax.xlane.f32.xlu0 %v1247
    %v1249 = vpop.xlane.xlu0 %1248
    %v1250 = vsub.f32 %v1245, %v1249
    %v1251 = vmul.f32 %v1250, 1.442695
    %v1252 = vpow.pop %v1251
    %v1253 = vsel %vm552, %v1252, 0.0
    %1254 = vadd.xlane.f32.xlu0 %v1253
    %v1255 = vpop.xlane.xlu0 %1254
    %v1256 = vrcp.pop %v1255
    %v1257 = vmul.f32 %v1252, %v1256
    %1258 = vrot.lane.b32.xlu0 %v990, 72
    %v1259 = vpop.permute.xlu0 %1258
    %1260 = vrot.lane.b32.xlu0 %v993, 72
    %v1261 = vpop.permute.xlu0 %1260
    %v1265 = vsel %vm552, %v1257, 0
    %1267 = vmatpush.msra.mxu0 0.0
    %1268 = vmatpush.msra.mxu0 0.0
    %1269 = vmatpush.msra.mxu0 0.0
    %1270 = vmatpush.msra.mxu0 0.0
    %1271 = vmatpush.msra.mxu0 0.0
    %1272 = vmatpush.msra.mxu0 0.0
    %1273 = vmatpush.msra.mxu0 0.0
    %1274 = vmatpush.msra.mxu0 0.0
    %1275 = vmatpush.msra.mxu0 0.0
    %1276 = vmatpush.msra.mxu0 0.0
    %1277 = vmatpush.msra.mxu0 0.0
    %1278 = vmatpush.msra.mxu0 0.0
    %1279 = vmatpush.msra.mxu0 0.0
    %1280 = vmatpush.msra.mxu0 0.0
    %1281 = vmatpush.msra.mxu0 %v1261
    %1282 = vmatpush.msra.mxu0 %v1259
    %1283 = vmatmul.f32.gmra.mxu0 %v1265
    %v1284 = vpop.f32.mrf.mxu0
    %v1285 = vadd.f32 0.0, %v1284
    %1286 = vdwg.mxu0
    %1288 = vrot.lane.b32.xlu0 %v1141, 8
    %v1289 = vpop.permute.xlu0 %1288
    %1292 = vrot.lane.b32.xlu0 %v1213, 16
    %v1293 = vpop.permute.xlu0 %1292
    %1296 = vrot.lane.b32.xlu0 %v1285, 24
    %v1297 = vpop.permute.xlu0 %1296
    %v1299 = vsel %vm282, %v1069, %v1289
    %v1300 = vsel %vm552, %v1299, %v1293
    %v1301 = vsel %vm554, %v1300, %v1297
    %v1302 = vperm.slane %v184, 1
    %v1304 = vsel %vm282, %v952, 0
    %v1307 = vsel %vm282, %v996, 0
    %v1310 = vsel %vm282, %v999, 0
    %1312 = vmatpush.xpose.msra.mxu0 0.0
    %1313 = vmatpush.xpose.msra.mxu0 0.0
    %1314 = vmatpush.xpose.msra.mxu0 0.0
    %1315 = vmatpush.xpose.msra.mxu0 0.0
    %1316 = vmatpush.xpose.msra.mxu0 0.0
    %1317 = vmatpush.xpose.msra.mxu0 0.0
    %1318 = vmatpush.xpose.msra.mxu0 0.0
    %1319 = vmatpush.xpose.msra.mxu0 0.0
    %1320 = vmatpush.xpose.msra.mxu0 0.0
    %1321 = vmatpush.xpose.msra.mxu0 0.0
    %1322 = vmatpush.xpose.msra.mxu0 0.0
    %1323 = vmatpush.xpose.msra.mxu0 0.0
    %1324 = vmatpush.xpose.msra.mxu0 0.0
    %1325 = vmatpush.xpose.msra.mxu0 0.0
    %1326 = vmatpush.xpose.msra.mxu0 %v1310
    %1327 = vmatpush.xpose.msra.mxu0 %v1307
    %1328 = vmatmul.f32.gmra.mxu0 %v1304
    %v1329 = vpop.f32.mrf.mxu0
    %v1330 = vadd.f32 %v1302, %v1329
    %1331 = vdwg.mxu0
    %v1332 = vsel %vm552, %v1330, -inf
    %1333 = vmax.xlane.f32.xlu0 %v1332
    %v1334 = vpop.xlane.xlu0 %1333
    %v1335 = vsub.f32 %v1330, %v1334
    %v1336 = vmul.f32 %v1335, 1.442695
    %v1337 = vpow.pop %v1336
    %v1338 = vsel %vm552, %v1337, 0.0
    %1339 = vadd.xlane.f32.xlu0 %v1338
    %v1340 = vpop.xlane.xlu0 %1339
    %v1341 = vrcp.pop %v1340
    %v1342 = vmul.f32 %v1337, %v1341
    %1343 = vrot.lane.b32.xlu0 %v996, 96
    %v1344 = vpop.permute.xlu0 %1343
    %1345 = vrot.lane.b32.xlu0 %v999, 96
    %v1346 = vpop.permute.xlu0 %1345
    %v1350 = vsel %vm552, %v1342, 0
    %1352 = vmatpush.msra.mxu0 0.0
    %1353 = vmatpush.msra.mxu0 0.0
    %1354 = vmatpush.msra.mxu0 0.0
    %1355 = vmatpush.msra.mxu0 0.0
    %1356 = vmatpush.msra.mxu0 0.0
    %1357 = vmatpush.msra.mxu0 0.0
    %1358 = vmatpush.msra.mxu0 0.0
    %1359 = vmatpush.msra.mxu0 0.0
    %1360 = vmatpush.msra.mxu0 0.0
    %1361 = vmatpush.msra.mxu0 0.0
    %1362 = vmatpush.msra.mxu0 0.0
    %1363 = vmatpush.msra.mxu0 0.0
    %1364 = vmatpush.msra.mxu0 0.0
    %1365 = vmatpush.msra.mxu0 0.0
    %1366 = vmatpush.msra.mxu0 %v1346
    %1367 = vmatpush.msra.mxu0 %v1344
    %1368 = vmatmul.f32.gmra.mxu0 %v1350
    %v1369 = vpop.f32.mrf.mxu0
    %v1370 = vadd.f32 0.0, %v1369
    %1371 = vdwg.mxu0
    %1372 = vrot.lane.b32.xlu0 %v952, 120
    %v1373 = vpop.permute.xlu0 %1372
    %1374 = vrot.lane.b32.xlu0 %v996, 120
    %v1375 = vpop.permute.xlu0 %1374
    %1376 = vrot.lane.b32.xlu0 %v999, 120
    %v1377 = vpop.permute.xlu0 %1376
    %v1378 = vsel %vm282, %v1373, 0
    %v1380 = vsel %vm282, %v1375, 0
    %v1382 = vsel %vm282, %v1377, 0
    %1384 = vmatpush.xpose.msra.mxu0 0.0
    %1385 = vmatpush.xpose.msra.mxu0 0.0
    %1386 = vmatpush.xpose.msra.mxu0 0.0
    %1387 = vmatpush.xpose.msra.mxu0 0.0
    %1388 = vmatpush.xpose.msra.mxu0 0.0
    %1389 = vmatpush.xpose.msra.mxu0 0.0
    %1390 = vmatpush.xpose.msra.mxu0 0.0
    %1391 = vmatpush.xpose.msra.mxu0 0.0
    %1392 = vmatpush.xpose.msra.mxu0 0.0
    %1393 = vmatpush.xpose.msra.mxu0 0.0
    %1394 = vmatpush.xpose.msra.mxu0 0.0
    %1395 = vmatpush.xpose.msra.mxu0 0.0
    %1396 = vmatpush.xpose.msra.mxu0 0.0
    %1397 = vmatpush.xpose.msra.mxu0 0.0
    %1398 = vmatpush.xpose.msra.mxu0 %v1382
    %1399 = vmatpush.xpose.msra.mxu0 %v1380
    %1400 = vmatmul.f32.gmra.mxu0 %v1378
    %v1401 = vpop.f32.mrf.mxu0
    %v1402 = vadd.f32 %v1302, %v1401
    %1403 = vdwg.mxu0
    %v1404 = vsel %vm552, %v1402, -inf
    %1405 = vmax.xlane.f32.xlu0 %v1404
    %v1406 = vpop.xlane.xlu0 %1405
    %v1407 = vsub.f32 %v1402, %v1406
    %v1408 = vmul.f32 %v1407, 1.442695
    %v1409 = vpow.pop %v1408
    %v1410 = vsel %vm552, %v1409, 0.0
    %1411 = vadd.xlane.f32.xlu0 %v1410
    %v1412 = vpop.xlane.xlu0 %1411
    %v1413 = vrcp.pop %v1412
    %v1414 = vmul.f32 %v1409, %v1413
    %1415 = vrot.lane.b32.xlu0 %v996, 88
    %v1416 = vpop.permute.xlu0 %1415
    %1417 = vrot.lane.b32.xlu0 %v999, 88
    %v1418 = vpop.permute.xlu0 %1417
    %v1422 = vsel %vm552, %v1414, 0
    %1424 = vmatpush.msra.mxu0 0.0
    %1425 = vmatpush.msra.mxu0 0.0
    %1426 = vmatpush.msra.mxu0 0.0
    %1427 = vmatpush.msra.mxu0 0.0
    %1428 = vmatpush.msra.mxu0 0.0
    %1429 = vmatpush.msra.mxu0 0.0
    %1430 = vmatpush.msra.mxu0 0.0
    %1431 = vmatpush.msra.mxu0 0.0
    %1432 = vmatpush.msra.mxu0 0.0
    %1433 = vmatpush.msra.mxu0 0.0
    %1434 = vmatpush.msra.mxu0 0.0
    %1435 = vmatpush.msra.mxu0 0.0
    %1436 = vmatpush.msra.mxu0 0.0
    %1437 = vmatpush.msra.mxu0 0.0
    %1438 = vmatpush.msra.mxu0 %v1418
    %1439 = vmatpush.msra.mxu0 %v1416
    %1440 = vmatmul.f32.gmra.mxu0 %v1422
    %v1441 = vpop.f32.mrf.mxu0
    %v1442 = vadd.f32 0.0, %v1441
    %1443 = vdwg.mxu0
    %1444 = vrot.lane.b32.xlu0 %v952, 112
    %v1445 = vpop.permute.xlu0 %1444
    %1446 = vrot.lane.b32.xlu0 %v996, 112
    %v1447 = vpop.permute.xlu0 %1446
    %1448 = vrot.lane.b32.xlu0 %v999, 112
    %v1449 = vpop.permute.xlu0 %1448
    %v1450 = vsel %vm282, %v1445, 0
    %v1452 = vsel %vm282, %v1447, 0
    %v1454 = vsel %vm282, %v1449, 0
    %1456 = vmatpush.xpose.msra.mxu0 0.0
    %1457 = vmatpush.xpose.msra.mxu0 0.0
    %1458 = vmatpush.xpose.msra.mxu0 0.0
    %1459 = vmatpush.xpose.msra.mxu0 0.0
    %1460 = vmatpush.xpose.msra.mxu0 0.0
    %1461 = vmatpush.xpose.msra.mxu0 0.0
    %1462 = vmatpush.xpose.msra.mxu0 0.0
    %1463 = vmatpush.xpose.msra.mxu0 0.0
    %1464 = vmatpush.xpose.msra.mxu0 0.0
    %1465 = vmatpush.xpose.msra.mxu0 0.0
    %1466 = vmatpush.xpose.msra.mxu0 0.0
    %1467 = vmatpush.xpose.msra.mxu0 0.0
    %1468 = vmatpush.xpose.msra.mxu0 0.0
    %1469 = vmatpush.xpose.msra.mxu0 0.0
    %1470 = vmatpush.xpose.msra.mxu0 %v1454
    %1471 = vmatpush.xpose.msra.mxu0 %v1452
    %1472 = vmatmul.f32.gmra.mxu0 %v1450
    %v1473 = vpop.f32.mrf.mxu0
    %v1474 = vadd.f32 %v1302, %v1473
    %1475 = vdwg.mxu0
    %v1476 = vsel %vm552, %v1474, -inf
    %1477 = vmax.xlane.f32.xlu0 %v1476
    %v1478 = vpop.xlane.xlu0 %1477
    %v1479 = vsub.f32 %v1474, %v1478
    %v1480 = vmul.f32 %v1479, 1.442695
    %v1481 = vpow.pop %v1480
    %v1482 = vsel %vm552, %v1481, 0.0
    %1483 = vadd.xlane.f32.xlu0 %v1482
    %v1484 = vpop.xlane.xlu0 %1483
    %v1485 = vrcp.pop %v1484
    %v1486 = vmul.f32 %v1481, %v1485
    %1487 = vrot.lane.b32.xlu0 %v996, 80
    %v1488 = vpop.permute.xlu0 %1487
    %1489 = vrot.lane.b32.xlu0 %v999, 80
    %v1490 = vpop.permute.xlu0 %1489
    %v1494 = vsel %vm552, %v1486, 0
    %1496 = vmatpush.msra.mxu0 0.0
    %1497 = vmatpush.msra.mxu0 0.0
    %1498 = vmatpush.msra.mxu0 0.0
    %1499 = vmatpush.msra.mxu0 0.0
    %1500 = vmatpush.msra.mxu0 0.0
    %1501 = vmatpush.msra.mxu0 0.0
    %1502 = vmatpush.msra.mxu0 0.0
    %1503 = vmatpush.msra.mxu0 0.0
    %1504 = vmatpush.msra.mxu0 0.0
    %1505 = vmatpush.msra.mxu0 0.0
    %1506 = vmatpush.msra.mxu0 0.0
    %1507 = vmatpush.msra.mxu0 0.0
    %1508 = vmatpush.msra.mxu0 0.0
    %1509 = vmatpush.msra.mxu0 0.0
    %1510 = vmatpush.msra.mxu0 %v1490
    %1511 = vmatpush.msra.mxu0 %v1488
    %1512 = vmatmul.f32.gmra.mxu0 %v1494
    %v1513 = vpop.f32.mrf.mxu0
    %v1514 = vadd.f32 0.0, %v1513
    %1515 = vdwg.mxu0
    %1516 = vrot.lane.b32.xlu0 %v952, 104
    %v1517 = vpop.permute.xlu0 %1516
    %1518 = vrot.lane.b32.xlu0 %v996, 104
    %v1519 = vpop.permute.xlu0 %1518
    %1520 = vrot.lane.b32.xlu0 %v999, 104
    %v1521 = vpop.permute.xlu0 %1520
    %v1522 = vsel %vm282, %v1517, 0
    %v1524 = vsel %vm282, %v1519, 0
    %v1526 = vsel %vm282, %v1521, 0
    %1528 = vmatpush.xpose.msra.mxu0 0.0
    %1529 = vmatpush.xpose.msra.mxu0 0.0
    %1530 = vmatpush.xpose.msra.mxu0 0.0
    %1531 = vmatpush.xpose.msra.mxu0 0.0
    %1532 = vmatpush.xpose.msra.mxu0 0.0
    %1533 = vmatpush.xpose.msra.mxu0 0.0
    %1534 = vmatpush.xpose.msra.mxu0 0.0
    %1535 = vmatpush.xpose.msra.mxu0 0.0
    %1536 = vmatpush.xpose.msra.mxu0 0.0
    %1537 = vmatpush.xpose.msra.mxu0 0.0
    %1538 = vmatpush.xpose.msra.mxu0 0.0
    %1539 = vmatpush.xpose.msra.mxu0 0.0
    %1540 = vmatpush.xpose.msra.mxu0 0.0
    %1541 = vmatpush.xpose.msra.mxu0 0.0
    %1542 = vmatpush.xpose.msra.mxu0 %v1526
    %1543 = vmatpush.xpose.msra.mxu0 %v1524
    %1544 = vmatmul.f32.gmra.mxu0 %v1522
    %v1545 = vpop.f32.mrf.mxu0
    %v1546 = vadd.f32 %v1302, %v1545
    %1547 = vdwg.mxu0
    %v1548 = vsel %vm552, %v1546, -inf
    %1549 = vmax.xlane.f32.xlu0 %v1548
    %v1550 = vpop.xlane.xlu0 %1549
    %v1551 = vsub.f32 %v1546, %v1550
    %v1552 = vmul.f32 %v1551, 1.442695
    %v1553 = vpow.pop %v1552
    %v1554 = vsel %vm552, %v1553, 0.0
    %1555 = vadd.xlane.f32.xlu0 %v1554
    %v1556 = vpop.xlane.xlu0 %1555
    %v1557 = vrcp.pop %v1556
    %v1558 = vmul.f32 %v1553, %v1557
    %1559 = vrot.lane.b32.xlu0 %v996, 72
    %v1560 = vpop.permute.xlu0 %1559
    %1561 = vrot.lane.b32.xlu0 %v999, 72
    %v1562 = vpop.permute.xlu0 %1561
    %v1566 = vsel %vm552, %v1558, 0
    %1568 = vmatpush.msra.mxu0 0.0
    %1569 = vmatpush.msra.mxu0 0.0
    %1570 = vmatpush.msra.mxu0 0.0
    %1571 = vmatpush.msra.mxu0 0.0
    %1572 = vmatpush.msra.mxu0 0.0
    %1573 = vmatpush.msra.mxu0 0.0
    %1574 = vmatpush.msra.mxu0 0.0
    %1575 = vmatpush.msra.mxu0 0.0
    %1576 = vmatpush.msra.mxu0 0.0
    %1577 = vmatpush.msra.mxu0 0.0
    %1578 = vmatpush.msra.mxu0 0.0
    %1579 = vmatpush.msra.mxu0 0.0
    %1580 = vmatpush.msra.mxu0 0.0
    %1581 = vmatpush.msra.mxu0 0.0
    %1582 = vmatpush.msra.mxu0 %v1562
    %1583 = vmatpush.msra.mxu0 %v1560
    %1584 = vmatmul.f32.gmra.mxu0 %v1566
    %v1585 = vpop.f32.mrf.mxu0
    %v1586 = vadd.f32 0.0, %v1585
    %1587 = vdwg.mxu0
    %1589 = vrot.lane.b32.xlu0 %v1442, 8
    %v1590 = vpop.permute.xlu0 %1589
    %1593 = vrot.lane.b32.xlu0 %v1514, 16
    %v1594 = vpop.permute.xlu0 %1593
    %1597 = vrot.lane.b32.xlu0 %v1586, 24
    %v1598 = vpop.permute.xlu0 %1597
    %v1600 = vsel %vm282, %v1370, %v1590
    %v1601 = vsel %vm552, %v1600, %v1594
    %v1602 = vsel %vm554, %v1601, %v1598
    %v1603 = vld [vmem:[#allocation14] sm:$0xff]
    %v1604 = vld [vmem:[#allocation14 + $0x8] sm:$0xff]
    %v1605 = vld [vmem:[#allocation14 + $0x10] sm:$0xff]
    %v1606 = vld [vmem:[#allocation14 + $0x18] sm:$0xff]
    %v1608 = vsel %vm186, %v1301, 0
    %v1611 = vsel %vm186, %v1602, 0
    %1613 = vmatpush.msra.mxu0 0.0
    %1614 = vmatpush.msra.mxu0 0.0
    %1615 = vmatpush.msra.mxu0 0.0
    %1616 = vmatpush.msra.mxu0 0.0
    %1617 = vmatpush.msra.mxu0 0.0
    %1618 = vmatpush.msra.mxu0 0.0
    %1619 = vmatpush.msra.mxu0 0.0
    %1620 = vmatpush.msra.mxu0 0.0
    %1621 = vmatpush.msra.mxu0 0.0
    %1622 = vmatpush.msra.mxu0 0.0
    %1623 = vmatpush.msra.mxu0 0.0
    %1624 = vmatpush.msra.mxu0 0.0
    %1625 = vmatpush.msra.mxu0 %v1606
    %1626 = vmatpush.msra.mxu0 %v1605
    %1627 = vmatpush.msra.mxu0 %v1604
    %1628 = vmatpush.msra.mxu0 %v1603
    %1629 = vmatmul.f32.gmra.mxu0 %v1608
    %v1630 = vpop.f32.mrf.mxu0
    %v1631 = vadd.f32 0.0, %v1630
    %1632 = vmatmul.f32.gmra.mxu0 %v1611
    %v1633 = vpop.f32.mrf.mxu0
    %v1634 = vadd.f32 0.0, %v1633
    %1635 = vdwg.mxu0
    %v1636 = vadd.f32 %v867, %v1631
    %v1637 = vadd.f32 %v868, %v1634
    %v1638 = vld [vmem:[#allocation10 + $0x4] sm:$0x1]
    %v1639 = vperm.slane %v1638, 0
    %v1640 = vadd.f32 %v1636, %v1639
    %v1641 = vadd.f32 %v1637, %v1639
    %v1642 = vsel %vm186, %v1640, 0.0
    %1643 = vadd.xlane.f32.xlu0 %v1642
    %v1644 = vpop.xlane.xlu0 %1643
    %v1645 = vsel %vm186, %v1641, 0.0
    %1646 = vadd.xlane.f32.xlu0 %v1645
    %v1647 = vpop.xlane.xlu0 %1646
    %v1648 = vmul.f32 %v1644, %v199
    %v1649 = vmul.f32 %v1647, %v199
    %v1650 = vsub.f32 %v1640, %v1648
    %v1651 = vsub.f32 %v1641, %v1649
    %v1652 = vmul.f32 %v1650, %v1650
    %v1653 = vmul.f32 %v1651, %v1651
    %v1654 = vsel %vm186, %v1652, 0.0
    %1655 = vadd.xlane.f32.xlu0 %v1654
    %v1656 = vpop.xlane.xlu0 %1655
    %v1657 = vsel %vm186, %v1653, 0.0
    %1658 = vadd.xlane.f32.xlu0 %v1657
    %v1659 = vpop.xlane.xlu0 %1658
    %v1660 = vmul.f32 %v1656, %v199
    %v1661 = vmul.f32 %v1659, %v199
    %v1662 = vadd.f32 %v1660, 1e-06
    %v1663 = vadd.f32 %v1661, 1e-06
    %v1664 = vrsqrt.pop %v1662
    %v1665 = vmul.f32 %v1664, %v1662
    %v1666 = vmul.f32 %v1665, %v1664
    %v1667 = vmul.f32 0.5, %v1666
    %v1668 = vsub.f32 1.5, %v1667
    %v1669 = vmul.f32 %v1664, %v1668
    %vm1670 = vweird.f32 %v1662
    %vm1671 = vweird.f32 %v1664
    %vm1672 = vmor %vm1670, %vm1671
    %v1673 = vsel %vm1672, %v1664, %v1669
    %v1674 = vrsqrt.pop %v1663
    %v1675 = vmul.f32 %v1674, %v1663
    %v1676 = vmul.f32 %v1675, %v1674
    %v1677 = vmul.f32 0.5, %v1676
    %v1678 = vsub.f32 1.5, %v1677
    %v1679 = vmul.f32 %v1674, %v1678
    %vm1680 = vweird.f32 %v1663
    %vm1681 = vweird.f32 %v1674
    %vm1682 = vmor %vm1680, %vm1681
    %v1683 = vsel %vm1682, %v1674, %v1679
    %v1684 = vmul.f32 %v1650, %v1673
    %v1685 = vmul.f32 %v1651, %v1683
    %v1686 = vperm.slane %v185, 4
    %v1687 = vmul.f32 %v1684, %v1686
    %v1688 = vmul.f32 %v1685, %v1686
    %v1689 = vperm.slane %v185, 5
    %v1690 = vadd.f32 %v1687, %v1689
    %v1691 = vadd.f32 %v1688, %v1689
    %v1692 = vld [vmem:[#allocation16] sm:$0xff]
    %v1693 = vld [vmem:[#allocation16 + $0x8] sm:$0xff]
    %v1694 = vld [vmem:[#allocation16 + $0x10] sm:$0xff]
    %v1695 = vld [vmem:[#allocation16 + $0x18] sm:$0xff]
    %v1696 = vld [vmem:[#allocation10 + $0x5] sm:$0x1]
    %v1697 = vperm.slane %v1696, 0
    %v1699 = vsel %vm186, %v1690, 0
    %v1702 = vsel %vm186, %v1691, 0
    %1704 = vmatpush.msra.mxu0 0.0
    %1705 = vmatpush.msra.mxu0 0.0
    %1706 = vmatpush.msra.mxu0 0.0
    %1707 = vmatpush.msra.mxu0 0.0
    %1708 = vmatpush.msra.mxu0 0.0
    %1709 = vmatpush.msra.mxu0 0.0
    %1710 = vmatpush.msra.mxu0 0.0
    %1711 = vmatpush.msra.mxu0 0.0
    %1712 = vmatpush.msra.mxu0 0.0
    %1713 = vmatpush.msra.mxu0 0.0
    %1714 = vmatpush.msra.mxu0 0.0
    %1715 = vmatpush.msra.mxu0 0.0
    %1716 = vmatpush.msra.mxu0 %v1695
    %1717 = vmatpush.msra.mxu0 %v1694
    %1718 = vmatpush.msra.mxu0 %v1693
    %1719 = vmatpush.msra.mxu0 %v1692
    %1720 = vmatmul.f32.gmra.mxu0 %v1699
    %v1721 = vpop.f32.mrf.mxu0
    %v1722 = vadd.f32 %v1697, %v1721
    %1723 = vmatmul.f32.gmra.mxu0 %v1702
    %v1724 = vpop.f32.mrf.mxu0
    %v1725 = vadd.f32 %v1697, %v1724
    %1726 = vdwg.mxu0
    %v1727 = vmax.f32 %v1722, 0.0
    %v1728 = vmax.f32 %v1725, 0.0
    %v1729 = vld [vmem:[%s12] sm:$0xff]
    %v1730 = vld [vmem:[%s12 + $0x8] sm:$0xff]
    %v1731 = vld [vmem:[%s12 + $0x10] sm:$0xff]
    %v1732 = vld [vmem:[%s12 + $0x18] sm:$0xff]
    %v1733 = vld [vmem:[%s12 + $0x20] sm:$0xff]
    %v1734 = vld [vmem:[%s12 + $0x28] sm:$0xff]
    %v1735 = vld [vmem:[%s12 + $0x30] sm:$0xff]
    %v1736 = vld [vmem:[%s12 + $0x38] sm:$0xff]
    %v1737 = vld [vmem:[#allocation10 + $0x6] sm:$0x1]
    %v1738 = vperm.slane %v1737, 0
    %vm1739 = vcmask 523264
    %v1741 = vsel %vm1739, %v1727, 0
    %v1744 = vsel %vm1739, %v1728, 0
    %1746 = vmatpush.msra.mxu0 0.0
    %1747 = vmatpush.msra.mxu0 0.0
    %1748 = vmatpush.msra.mxu0 0.0
    %1749 = vmatpush.msra.mxu0 0.0
    %1750 = vmatpush.msra.mxu0 0.0
    %1751 = vmatpush.msra.mxu0 0.0
    %1752 = vmatpush.msra.mxu0 0.0
    %1753 = vmatpush.msra.mxu0 0.0
    %1754 = vmatpush.msra.mxu0 %v1736
    %1755 = vmatpush.msra.mxu0 %v1735
    %1756 = vmatpush.msra.mxu0 %v1734
    %1757 = vmatpush.msra.mxu0 %v1733
    %1758 = vmatpush.msra.mxu0 %v1732
    %1759 = vmatpush.msra.mxu0 %v1731
    %1760 = vmatpush.msra.mxu0 %v1730
    %1761 = vmatpush.msra.mxu0 %v1729
    %1762 = vmatmul.f32.gmra.mxu0 %v1741
    %v1763 = vpop.f32.mrf.mxu0
    %v1764 = vadd.f32 %v1738, %v1763
    %1765 = vmatmul.f32.gmra.mxu0 %v1744
    %v1766 = vpop.f32.mrf.mxu0
    %v1767 = vadd.f32 %v1738, %v1766
    %1768 = vdwg.mxu0
    %v1769 = vadd.f32 %v1640, %v1764
    %v1770 = vadd.f32 %v1641, %v1767
    %1771 = vst.msk [vmem:[#allocation17] sm:$0xff] %vm186, %v1769
    %1772 = vst.msk [vmem:[#allocation17 + $0x8] sm:$0xff] %vm186, %v1770
    // Predicated region
    $region90: #{tpu_custom_call.1} parent=1 // pred_check
      _
    $region91: #{tpu_custom_call.1} parent=1 // pred_check_branch
      %1774 = sbr.rel (0) target = $region93
    $region92: #{tpu_custom_call.1} parent=1 // pred_region
      %1776 = vsyncadd [#allocation4], 0
      %s1777 = sshll.u32 [#allocation17], 4
      %s1778 = int_to_ptr.vmem [resolvable:$true] %s1777
      %s1779 = sshll.u32 %s13, 4
      %s1780 = int_to_ptr.hbm [resolvable:$true] %s1779
      %1785 = dma.vmem_to_hbm [thread:$0]  %s1778, 256, %s1780, [#allocation4], 128, 128, 8
    $region93: #{tpu_custom_call.1} parent=1 // pred_fallthru
      _
    // Predicated region
    $region94: #{tpu_custom_call.1} parent=1 // pred_check
      _
    $region95: #{tpu_custom_call.1} parent=1 // pred_check_branch
      %1787 = sbr.rel (0) target = $region97
    $region96: #{tpu_custom_call.1} parent=1 // pred_region
      %1789 = dma.done [#allocation4], 256
    $region97: #{tpu_custom_call.1} parent=1 // pred_fallthru
      _
    %1790 = vsyncpa [#allocation3], 1
    %1791 = vsyncpa [#allocation6], 1
    %1792 = vsyncpa [#allocation9], 1
    %1793 = vsyncpa [#allocation12], 1
    %1794 = vsyncpa [#allocation15], 1
    %1795 = vsyncpa [#allocation4], 1

</llo_original>
